<compile_context>
chip_gen: v5e
topology: v5e:2x2
jax: 0.10.0
libtpu: 0.0.40
codegen_flags: <defaults>
</compile_context>

<pallas_src>
import functools

import jax
import jax.numpy as jnp
from jax.experimental import pallas as pl
from jax.experimental.pallas import tpu as pltpu


def _round_up(x, m):
    return ((x + m - 1) // m) * m


# ----------------------------- Pallas kernel ------------------------------ #
def _mp_kernel(depth, d_v_p, d_h_p, d_o_p,
               V_ref, A_ref, Vd_ref,
               Wi_ref, Wh_ref, Wo_ref, Wd_ref, b_ref,
               out_ref):
    # V/V_d/A/weights are bf16 MXU operands; biases and all accumulation are f32.
    V = V_ref[...]                                                  # [n, d_v_p] bf16

    b_all = b_ref[...]                                              # [8, d_max_p] f32
    b_i = b_all[0:1, :d_h_p]
    b_o = b_all[1:2, :d_o_p]
    b_d = b_all[2:3, :d_o_p]

    # initial hidden state: h0 = relu(V @ W_i + b_i)   (bf16 MXU, f32 accumulate)
    h0 = jnp.maximum(
        jnp.dot(V, Wi_ref[...], preferred_element_type=jnp.float32) + b_i,
        0.0,
    )
    h = h0

    # message-passing iterations.  depth is a static Python int and small here;
    # A and W_h are read through their refs each iteration so an n x n / d_h x d_h
    # tensor is never pinned in vregs across the unrolled trace.
    # (switch to lax.fori_loop(..., unroll=True) once depth >= 8 or d_h_p >= 256)
    for _ in range(depth):
        m = jnp.dot(A_ref[...], h.astype(jnp.bfloat16),
                    preferred_element_type=jnp.float32)             # aggregate
        h = jnp.maximum(
            h0 + jnp.dot(m.astype(jnp.bfloat16), Wh_ref[...],
                         preferred_element_type=jnp.float32),
            0.0,
        )

    # fused readout without concat:  relu(V @ W_o_v + h @ W_o_h + b_o)
    # Wo_ref rows [:d_v_p] hold W_o_v, rows [d_v_p:] hold W_o_h (static views are free).
    h_b = h.astype(jnp.bfloat16)
    H = jnp.maximum(
        jnp.dot(V, Wo_ref[0:d_v_p, :], preferred_element_type=jnp.float32)
        + jnp.dot(h_b, Wo_ref[d_v_p:d_v_p + d_h_p, :],
                  preferred_element_type=jnp.float32)
        + b_o,
        0.0,
    )

    # fold in extra node descriptors: relu(H @ W_d_h + V_d @ W_d_vd + b_d)
    H_b = H.astype(jnp.bfloat16)
    d_vd_p = Vd_ref.shape[-1]
    out = jnp.maximum(
        jnp.dot(H_b, Wd_ref[0:d_o_p, :], preferred_element_type=jnp.float32)
        + jnp.dot(Vd_ref[...], Wd_ref[d_o_p:d_o_p + d_vd_p, :],
                  preferred_element_type=jnp.float32)
        + b_d,
        0.0,
    )

    out_ref[...] = out.astype(out_ref.dtype)                        # lane-dense store


# ------------------------ batched kernel driver ---------------------------- #
def multi_message_passing_pallas(packed, V_s, A_s, Vd_s, depth):
    """One gridded pallas_call over all components (leading axis C)."""
    C, n_pad, d_v_p = V_s.shape
    d_vd_p = Vd_s.shape[-1]
    d_h_p = packed["W_h"].shape[-1]
    d_o_p = packed["W_d"].shape[-1]
    d_max_p = packed["b_all"].shape[-1]

    def spec(rows, cols):
        # squeeze the component axis; whole padded 2-D operand resident per step
        return pl.BlockSpec((None, rows, cols), lambda c: (c, 0, 0))

    # --- VMEM budget & cost estimate (per component / per grid step) --------
    bytes_in = (n_pad * d_v_p * 2          # V        (bf16)
                + n_pad * n_pad * 2        # A        (bf16)
                + n_pad * d_vd_p * 2       # V_d      (bf16)
                + d_v_p * d_h_p * 2        # W_i      (bf16)
                + d_h_p * d_h_p * 2        # W_h      (bf16)
                + (d_v_p + d_h_p) * d_o_p * 2    # W_o fused (bf16)
                + (d_o_p + d_vd_p) * d_o_p * 2   # W_d fused (bf16)
                + 8 * d_max_p * 4)         # packed biases (f32)
    bytes_out = n_pad * d_o_p * 4
    live_f32 = 4 * n_pad * max(d_h_p, d_o_p) * 4          # h0/h/m/H working set
    vmem_est = 2 * (bytes_in + bytes_out) + live_f32       # double-buffered I/O
    # raise the scoped-VMEM default when the double-buffered A busts it; cap at
    # v7x physical (64 MiB) so the same code runs on all generations.
    vmem_limit = int(min(max(vmem_est + (2 << 20), 32 << 20), 64 << 20))

    flops_per = (2 * n_pad * d_v_p * d_h_p
                 + depth * (2 * n_pad * n_pad * d_h_p + 2 * n_pad * d_h_p * d_h_p)
                 + 2 * n_pad * (d_v_p + d_h_p) * d_o_p
                 + 2 * n_pad * (d_o_p + d_vd_p) * d_o_p)
    cost = pl.CostEstimate(flops=C * flops_per, transcendentals=0,
                           bytes_accessed=C * (bytes_in + bytes_out))

    kernel = functools.partial(_mp_kernel, depth, d_v_p, d_h_p, d_o_p)
    return pl.pallas_call(
        kernel,
        out_shape=jax.ShapeDtypeStruct((C, n_pad, d_o_p), jnp.float32),
        grid=(C,),
        in_specs=[
            spec(n_pad, d_v_p),            # V   (bf16)
            spec(n_pad, n_pad),            # A   (bf16)
            spec(n_pad, d_vd_p),           # V_d (bf16)
            spec(d_v_p, d_h_p),            # W_i (bf16)
            spec(d_h_p, d_h_p),            # W_h (bf16)
            spec(d_v_p + d_h_p, d_o_p),    # W_o fused = [W_o_v ; W_o_h] (bf16)
            spec(d_o_p + d_vd_p, d_o_p),   # W_d fused = [W_d_h ; W_d_vd] (bf16)
            spec(8, d_max_p),              # packed biases [b_i; b_o; b_d] (f32)
        ],
        out_specs=spec(n_pad, d_o_p),
        compiler_params=pltpu.CompilerParams(
            dimension_semantics=("parallel",),   # independent components -> megacore on v7x
            vmem_limit_bytes=vmem_limit,
        ),
        cost_estimate=cost,
    )(V_s, A_s, Vd_s,
      packed["W_i"], packed["W_h"], packed["W_o"], packed["W_d"], packed["b_all"])


# ------------------------- module-level wrapper ---------------------------- #
class MultiInputMessagePassing:
    """Applies one message-passing block per component, returns list of encodings."""

    def __init__(self, convs_params, depth=3):
        if len(convs_params) == 0:
            raise ValueError("arg 'convs' was empty!")
        self.convs = list(convs_params)
        self.depth = depth

        p0 = self.convs[0]
        self.d_v = p0["W_i"].shape[0]
        self.d_h = p0["W_i"].shape[1]
        self.d_o = p0["W_d_h"].shape[1]
        self.d_vd = p0["W_d_vd"].shape[0]
        # TODO(synk): heterogeneous per-component dims would need per-group packing
        # or separate calls; this implementation assumes one shared dimensionality.
        for p in self.convs:
            assert p["W_i"].shape == (self.d_v, self.d_h)
            assert p["W_d_h"].shape == (self.d_o, self.d_o)
            assert p["W_d_vd"].shape == (self.d_vd, self.d_o)

        self.d_v_p = _round_up(self.d_v, 128)
        self.d_h_p = _round_up(self.d_h, 128)
        self.d_o_p = _round_up(self.d_o, 128)
        self.d_vd_p = _round_up(self.d_vd, 128)
        self.d_max_p = max(self.d_h_p, self.d_o_p)

        self._packed = self._pack_params()

    def _pack_params(self):
        """Zero-pad feature dims to 128 multiples, fuse readout weights, pack biases,
        stack on C, cast MXU operands to bf16."""
        d_v, d_h, d_o, d_vd = self.d_v, self.d_h, self.d_o, self.d_vd
        d_v_p, d_h_p, d_o_p, d_vd_p = self.d_v_p, self.d_h_p, self.d_o_p, self.d_vd_p
        d_max_p = self.d_max_p
        Wi, Wh, Wo, Wd, Ball = [], [], [], [], []
        for p in self.convs:
            Wi.append(jnp.zeros((d_v_p, d_h_p), jnp.float32).at[:d_v, :d_h].set(p["W_i"]))
            Wh.append(jnp.zeros((d_h_p, d_h_p), jnp.float32).at[:d_h, :d_h].set(p["W_h"]))
            Wo.append(jnp.zeros((d_v_p + d_h_p, d_o_p), jnp.float32)
                      .at[:d_v, :d_o].set(p["W_o_v"])
                      .at[d_v_p:d_v_p + d_h, :d_o].set(p["W_o_h"]))
            Wd.append(jnp.zeros((d_o_p + d_vd_p, d_o_p), jnp.float32)
                      .at[:d_o, :d_o].set(p["W_d_h"])
                      .at[d_o_p:d_o_p + d_vd, :d_o].set(p["W_d_vd"]))
            # single (8, d_max_p) f32 operand: row0=b_i, row1=b_o, row2=b_d
            Ball.append(jnp.zeros((8, d_max_p), jnp.float32)
                        .at[0, :d_h].set(p["b_i"][0])
                        .at[1, :d_o].set(p["b_o"][0])
                        .at[2, :d_o].set(p["b_d"][0]))
        return {
            "W_i": jnp.stack(Wi).astype(jnp.bfloat16),
            "W_h": jnp.stack(Wh).astype(jnp.bfloat16),
            "W_o": jnp.stack(Wo).astype(jnp.bfloat16),
            "W_d": jnp.stack(Wd).astype(jnp.bfloat16),
            "b_all": jnp.stack(Ball),
        }

    def __len__(self):
        return len(self.convs)

    @property
    def output_dim(self):
        return sum(p["W_d_h"].shape[1] for p in self.convs)

    def forward(self, inputs):
        # inputs: iterable of (G, V_d) with G = (V, A)
        inputs = list(inputs)
        assert len(inputs) == len(self.convs)
        ns = [V.shape[0] for (V, A), V_d in inputs]
        # NOTE: n_pad derives from max(ns) -> a new max component size retraces.
        # Padded output rows carry relu(b)-derived garbage; they are sliced off
        # below and padded A columns are zero so they never feed valid rows.
        n_pad = max(_round_up(max(ns), 16), 16)   # sublane/bf16-packing friendly

        Vs, As, Vds = [], [], []
        for (V, A), V_d in inputs:
            n = V.shape[0]
            Vs.append(jnp.pad(V, ((0, n_pad - n), (0, self.d_v_p - self.d_v))))
            As.append(jnp.pad(A, ((0, n_pad - n), (0, n_pad - n))))
            Vds.append(jnp.pad(V_d, ((0, n_pad - n), (0, self.d_vd_p - self.d_vd))))
        # bf16 activations from the host: halves the HBM->VMEM DMA bytes and the
        # values already went through bf16 before every MXU use anyway.
        V_s = jnp.stack(Vs).astype(jnp.bfloat16)     # [C, n_pad, d_v_p]
        A_s = jnp.stack(As).astype(jnp.bfloat16)     # [C, n_pad, n_pad] ({0,1} exact)
        Vd_s = jnp.stack(Vds).astype(jnp.bfloat16)   # [C, n_pad, d_vd_p]

        out = multi_message_passing_pallas(self._packed, V_s, A_s, Vd_s, self.depth)
        # slice padded rows/lanes back off
        return [out[c, :n, :self.d_o] for c, n in enumerate(ns)]


# ----------------------- deterministic parameter init ---------------------- #
def init_conv_params(key, d_v, d_vd, d_h, d_o):
    ks = jax.random.split(key, 6)
    s = 0.1
    return {
        "W_i":   s * jax.random.normal(ks[0], (d_v, d_h), jnp.float32),
        "b_i":   jnp.zeros((1, d_h), jnp.float32),
        "W_h":   s * jax.random.normal(ks[1], (d_h, d_h), jnp.float32),
        "W_o_v": s * jax.random.normal(ks[2], (d_v, d_o), jnp.float32),
        "W_o_h": s * jax.random.normal(ks[3], (d_h, d_o), jnp.float32),
        "b_o":   jnp.zeros((1, d_o), jnp.float32),
        "W_d_h":  s * jax.random.normal(ks[4], (d_o, d_o), jnp.float32),
        "W_d_vd": s * jax.random.normal(ks[5], (d_vd, d_o), jnp.float32),
        "b_d":   jnp.zeros((1, d_o), jnp.float32),
    }


# --------------------------- pure-JAX reference ---------------------------- #
def _reference(params, V, A, V_d, depth):
    h0 = jax.nn.relu(V @ params["W_i"] + params["b_i"])
    h = h0
    for _ in range(depth):
        h = jax.nn.relu(h0 + (A @ h) @ params["W_h"])
    H = jax.nn.relu(V @ params["W_o_v"] + h @ params["W_o_h"] + params["b_o"])
    H = jax.nn.relu(H @ params["W_d_h"] + V_d @ params["W_d_vd"] + params["b_d"])
    return H


# ----------------------------------- main ---------------------------------- #
if __name__ == "__main__":
    key = jax.random.PRNGKey(0)
    d_v, d_vd, d_h, d_o, depth = 8, 4, 32, 32, 3
    n_nodes = [16, 24]                     # two components of different size

    k_params, k_data = jax.random.split(key)
    pkeys = jax.random.split(k_params, len(n_nodes))
    convs = [init_conv_params(pk, d_v, d_vd, d_h, d_o) for pk in pkeys]
    model = MultiInputMessagePassing(convs, depth=depth)

    inputs = []
    dkeys = jax.random.split(k_data, len(n_nodes))
    for n, dk in zip(n_nodes, dkeys):
        kv, ka, kd = jax.random.split(dk, 3)
        V = jax.random.normal(kv, (n, d_v), jnp.float32)
        A = (jax.random.uniform(ka, (n, n)) < 0.3).astype(jnp.float32)
        A = jnp.maximum(A, A.T) * (1.0 - jnp.eye(n, dtype=jnp.float32))  # symmetric, no self-loop
        V_d = jax.random.normal(kd, (n, d_vd), jnp.float32)
        inputs.append(((V, A), V_d))

    outs = model.forward(inputs)
    outs = [jax.block_until_ready(o) for o in outs]

    # correctness check against pure-f32 JAX reference.  Tolerance loosened to
    # cover bf16 MXU operands (f32 accumulation); relative error is ~1%.
    for p, ((V, A), V_d), o in zip(model.convs, inputs, outs):
        ref = _reference(p, V, A, V_d, depth)
        assert o.shape == ref.shape
        assert jnp.allclose(o, ref, atol=5e-2, rtol=5e-2), float(jnp.max(jnp.abs(o - ref)))

    # TODO(synk): the abstract `MessagePassing` base class is not provided upstream;
    # a chemprop-style dense-adjacency block was synthesized as the per-component conv.
    print("KERNEL_OK")
</pallas_src>

<mosaic_0001>
module attributes {stable_mosaic.version = 11 : i64} {
  func.func @_mp_kernel(%arg0: i32, %arg1: memref<1x32x128xbf16, #tpu.memory_space<vmem>>, %arg2: memref<1x32x32xbf16, #tpu.memory_space<vmem>>, %arg3: memref<1x32x128xbf16, #tpu.memory_space<vmem>>, %arg4: memref<1x128x128xbf16, #tpu.memory_space<vmem>>, %arg5: memref<1x128x128xbf16, #tpu.memory_space<vmem>>, %arg6: memref<1x256x128xbf16, #tpu.memory_space<vmem>>, %arg7: memref<1x256x128xbf16, #tpu.memory_space<vmem>>, %arg8: memref<1x8x128xf32, #tpu.memory_space<vmem>>, %arg9: memref<1x32x128xf32, #tpu.memory_space<vmem>>) attributes {dimension_semantics = [#tpu.dimension_semantics<parallel>], iteration_bounds = array<i64: 2>, scalar_prefetch = 0 : i64, scratch_operands = 0 : i64, tpu.core_type = #tpu.core_type<tc>, window_params = [{transform_indices = @transform_0, window_bounds = array<i64: 1, 32, 128>}, {transform_indices = @transform_1, window_bounds = array<i64: 1, 32, 32>}, {transform_indices = @transform_2, window_bounds = array<i64: 1, 32, 128>}, {transform_indices = @transform_3, window_bounds = array<i64: 1, 128, 128>}, {transform_indices = @transform_4, window_bounds = array<i64: 1, 128, 128>}, {transform_indices = @transform_5, window_bounds = array<i64: 1, 256, 128>}, {transform_indices = @transform_6, window_bounds = array<i64: 1, 256, 128>}, {transform_indices = @transform_7, window_bounds = array<i64: 1, 8, 128>}, {transform_indices = @transform_8, window_bounds = array<i64: 1, 32, 128>}]} {
    %c0 = arith.constant 0 : index
    %c0_0 = arith.constant 0 : index
    %c0_1 = arith.constant 0 : index
    %0 = vector.load %arg1[%c0, %c0_0, %c0_1] : memref<1x32x128xbf16, #tpu.memory_space<vmem>>, vector<1x32x128xbf16>
    %1 = vector.shape_cast %0 : vector<1x32x128xbf16> to vector<32x128xbf16>
    %c0_2 = arith.constant 0 : index
    %c0_3 = arith.constant 0 : index
    %c0_4 = arith.constant 0 : index
    %2 = vector.load %arg8[%c0_2, %c0_3, %c0_4] : memref<1x8x128xf32, #tpu.memory_space<vmem>>, vector<1x8x128xf32>
    %3 = vector.shape_cast %2 : vector<1x8x128xf32> to vector<8x128xf32>
    %4 = vector.extract_strided_slice %3 {offsets = [0, 0], sizes = [1, 128], strides = [1, 1]} : vector<8x128xf32> to vector<1x128xf32>
    %5 = vector.extract_strided_slice %3 {offsets = [1, 0], sizes = [1, 128], strides = [1, 1]} : vector<8x128xf32> to vector<1x128xf32>
    %6 = vector.extract_strided_slice %3 {offsets = [2, 0], sizes = [1, 128], strides = [1, 1]} : vector<8x128xf32> to vector<1x128xf32>
    %c0_5 = arith.constant 0 : index
    %c0_6 = arith.constant 0 : index
    %c0_7 = arith.constant 0 : index
    %7 = vector.load %arg4[%c0_5, %c0_6, %c0_7] : memref<1x128x128xbf16, #tpu.memory_space<vmem>>, vector<1x128x128xbf16>
    %8 = vector.shape_cast %7 : vector<1x128x128xbf16> to vector<128x128xbf16>
    %cst = arith.constant dense<0.000000e+00> : vector<32x128xf32>
    %9 = tpu.matmul %1, %8, %cst {dimension_numbers = #tpu.dot_dimension_numbers<[1], [0], [0], [1], [0, 0, 1, 1], [], []>} : vector<32x128xbf16>, vector<128x128xbf16>, vector<32x128xf32> -> vector<32x128xf32>
    %10 = vector.broadcast %4 : vector<1x128xf32> to vector<32x128xf32>
    %11 = arith.addf %9, %10 : vector<32x128xf32>
    %cst_8 = arith.constant 0.000000e+00 : f32
    %12 = vector.broadcast %cst_8 : f32 to vector<32x128xf32>
    %13 = arith.maximumf %11, %12 : vector<32x128xf32>
    %c0_9 = arith.constant 0 : index
    %c0_10 = arith.constant 0 : index
    %c0_11 = arith.constant 0 : index
    %14 = vector.load %arg2[%c0_9, %c0_10, %c0_11] : memref<1x32x32xbf16, #tpu.memory_space<vmem>>, vector<1x32x32xbf16>
    %15 = vector.shape_cast %14 : vector<1x32x32xbf16> to vector<32x32xbf16>
    %16 = arith.truncf %13 : vector<32x128xf32> to vector<32x128xbf16>
    %cst_12 = arith.constant dense<0.000000e+00> : vector<32x128xf32>
    %17 = tpu.matmul %15, %16, %cst_12 {dimension_numbers = #tpu.dot_dimension_numbers<[1], [0], [0], [1], [0, 0, 1, 1], [], []>} : vector<32x32xbf16>, vector<32x128xbf16>, vector<32x128xf32> -> vector<32x128xf32>
    %18 = arith.truncf %17 : vector<32x128xf32> to vector<32x128xbf16>
    %c0_13 = arith.constant 0 : index
    %c0_14 = arith.constant 0 : index
    %c0_15 = arith.constant 0 : index
    %19 = vector.load %arg5[%c0_13, %c0_14, %c0_15] : memref<1x128x128xbf16, #tpu.memory_space<vmem>>, vector<1x128x128xbf16>
    %20 = vector.shape_cast %19 : vector<1x128x128xbf16> to vector<128x128xbf16>
    %cst_16 = arith.constant dense<0.000000e+00> : vector<32x128xf32>
    %21 = tpu.matmul %18, %20, %cst_16 {dimension_numbers = #tpu.dot_dimension_numbers<[1], [0], [0], [1], [0, 0, 1, 1], [], []>} : vector<32x128xbf16>, vector<128x128xbf16>, vector<32x128xf32> -> vector<32x128xf32>
    %22 = arith.addf %13, %21 : vector<32x128xf32>
    %cst_17 = arith.constant 0.000000e+00 : f32
    %23 = vector.broadcast %cst_17 : f32 to vector<32x128xf32>
    %24 = arith.maximumf %22, %23 : vector<32x128xf32>
    %c0_18 = arith.constant 0 : index
    %c0_19 = arith.constant 0 : index
    %c0_20 = arith.constant 0 : index
    %25 = vector.load %arg2[%c0_18, %c0_19, %c0_20] : memref<1x32x32xbf16, #tpu.memory_space<vmem>>, vector<1x32x32xbf16>
    %26 = vector.shape_cast %25 : vector<1x32x32xbf16> to vector<32x32xbf16>
    %27 = arith.truncf %24 : vector<32x128xf32> to vector<32x128xbf16>
    %cst_21 = arith.constant dense<0.000000e+00> : vector<32x128xf32>
    %28 = tpu.matmul %26, %27, %cst_21 {dimension_numbers = #tpu.dot_dimension_numbers<[1], [0], [0], [1], [0, 0, 1, 1], [], []>} : vector<32x32xbf16>, vector<32x128xbf16>, vector<32x128xf32> -> vector<32x128xf32>
    %29 = arith.truncf %28 : vector<32x128xf32> to vector<32x128xbf16>
    %c0_22 = arith.constant 0 : index
    %c0_23 = arith.constant 0 : index
    %c0_24 = arith.constant 0 : index
    %30 = vector.load %arg5[%c0_22, %c0_23, %c0_24] : memref<1x128x128xbf16, #tpu.memory_space<vmem>>, vector<1x128x128xbf16>
    %31 = vector.shape_cast %30 : vector<1x128x128xbf16> to vector<128x128xbf16>
    %cst_25 = arith.constant dense<0.000000e+00> : vector<32x128xf32>
    %32 = tpu.matmul %29, %31, %cst_25 {dimension_numbers = #tpu.dot_dimension_numbers<[1], [0], [0], [1], [0, 0, 1, 1], [], []>} : vector<32x128xbf16>, vector<128x128xbf16>, vector<32x128xf32> -> vector<32x128xf32>
    %33 = arith.addf %13, %32 : vector<32x128xf32>
    %cst_26 = arith.constant 0.000000e+00 : f32
    %34 = vector.broadcast %cst_26 : f32 to vector<32x128xf32>
    %35 = arith.maximumf %33, %34 : vector<32x128xf32>
    %c0_27 = arith.constant 0 : index
    %c0_28 = arith.constant 0 : index
    %c0_29 = arith.constant 0 : index
    %36 = vector.load %arg2[%c0_27, %c0_28, %c0_29] : memref<1x32x32xbf16, #tpu.memory_space<vmem>>, vector<1x32x32xbf16>
    %37 = vector.shape_cast %36 : vector<1x32x32xbf16> to vector<32x32xbf16>
    %38 = arith.truncf %35 : vector<32x128xf32> to vector<32x128xbf16>
    %cst_30 = arith.constant dense<0.000000e+00> : vector<32x128xf32>
    %39 = tpu.matmul %37, %38, %cst_30 {dimension_numbers = #tpu.dot_dimension_numbers<[1], [0], [0], [1], [0, 0, 1, 1], [], []>} : vector<32x32xbf16>, vector<32x128xbf16>, vector<32x128xf32> -> vector<32x128xf32>
    %40 = arith.truncf %39 : vector<32x128xf32> to vector<32x128xbf16>
    %c0_31 = arith.constant 0 : index
    %c0_32 = arith.constant 0 : index
    %c0_33 = arith.constant 0 : index
    %41 = vector.load %arg5[%c0_31, %c0_32, %c0_33] : memref<1x128x128xbf16, #tpu.memory_space<vmem>>, vector<1x128x128xbf16>
    %42 = vector.shape_cast %41 : vector<1x128x128xbf16> to vector<128x128xbf16>
    %cst_34 = arith.constant dense<0.000000e+00> : vector<32x128xf32>
    %43 = tpu.matmul %40, %42, %cst_34 {dimension_numbers = #tpu.dot_dimension_numbers<[1], [0], [0], [1], [0, 0, 1, 1], [], []>} : vector<32x128xbf16>, vector<128x128xbf16>, vector<32x128xf32> -> vector<32x128xf32>
    %44 = arith.addf %13, %43 : vector<32x128xf32>
    %cst_35 = arith.constant 0.000000e+00 : f32
    %45 = vector.broadcast %cst_35 : f32 to vector<32x128xf32>
    %46 = arith.maximumf %44, %45 : vector<32x128xf32>
    %47 = arith.truncf %46 : vector<32x128xf32> to vector<32x128xbf16>
    %c0_36 = arith.constant 0 : index
    %c0_37 = arith.constant 0 : index
    %c0_38 = arith.constant 0 : index
    %48 = vector.load %arg6[%c0_36, %c0_37, %c0_38] : memref<1x256x128xbf16, #tpu.memory_space<vmem>>, vector<1x128x128xbf16>
    %49 = vector.shape_cast %48 : vector<1x128x128xbf16> to vector<128x128xbf16>
    %cst_39 = arith.constant dense<0.000000e+00> : vector<32x128xf32>
    %50 = tpu.matmul %1, %49, %cst_39 {dimension_numbers = #tpu.dot_dimension_numbers<[1], [0], [0], [1], [0, 0, 1, 1], [], []>} : vector<32x128xbf16>, vector<128x128xbf16>, vector<32x128xf32> -> vector<32x128xf32>
    %c0_40 = arith.constant 0 : index
    %c128 = arith.constant 128 : index
    %c0_41 = arith.constant 0 : index
    %51 = vector.load %arg6[%c0_40, %c128, %c0_41] : memref<1x256x128xbf16, #tpu.memory_space<vmem>>, vector<1x128x128xbf16>
    %52 = vector.shape_cast %51 : vector<1x128x128xbf16> to vector<128x128xbf16>
    %cst_42 = arith.constant dense<0.000000e+00> : vector<32x128xf32>
    %53 = tpu.matmul %47, %52, %cst_42 {dimension_numbers = #tpu.dot_dimension_numbers<[1], [0], [0], [1], [0, 0, 1, 1], [], []>} : vector<32x128xbf16>, vector<128x128xbf16>, vector<32x128xf32> -> vector<32x128xf32>
    %54 = arith.addf %50, %53 : vector<32x128xf32>
    %55 = vector.broadcast %5 : vector<1x128xf32> to vector<32x128xf32>
    %56 = arith.addf %54, %55 : vector<32x128xf32>
    %cst_43 = arith.constant 0.000000e+00 : f32
    %57 = vector.broadcast %cst_43 : f32 to vector<32x128xf32>
    %58 = arith.maximumf %56, %57 : vector<32x128xf32>
    %59 = arith.truncf %58 : vector<32x128xf32> to vector<32x128xbf16>
    %c0_44 = arith.constant 0 : index
    %c0_45 = arith.constant 0 : index
    %c0_46 = arith.constant 0 : index
    %60 = vector.load %arg7[%c0_44, %c0_45, %c0_46] : memref<1x256x128xbf16, #tpu.memory_space<vmem>>, vector<1x128x128xbf16>
    %61 = vector.shape_cast %60 : vector<1x128x128xbf16> to vector<128x128xbf16>
    %cst_47 = arith.constant dense<0.000000e+00> : vector<32x128xf32>
    %62 = tpu.matmul %59, %61, %cst_47 {dimension_numbers = #tpu.dot_dimension_numbers<[1], [0], [0], [1], [0, 0, 1, 1], [], []>} : vector<32x128xbf16>, vector<128x128xbf16>, vector<32x128xf32> -> vector<32x128xf32>
    %c0_48 = arith.constant 0 : index
    %c0_49 = arith.constant 0 : index
    %c0_50 = arith.constant 0 : index
    %63 = vector.load %arg3[%c0_48, %c0_49, %c0_50] : memref<1x32x128xbf16, #tpu.memory_space<vmem>>, vector<1x32x128xbf16>
    %64 = vector.shape_cast %63 : vector<1x32x128xbf16> to vector<32x128xbf16>
    %c0_51 = arith.constant 0 : index
    %c128_52 = arith.constant 128 : index
    %c0_53 = arith.constant 0 : index
    %65 = vector.load %arg7[%c0_51, %c128_52, %c0_53] : memref<1x256x128xbf16, #tpu.memory_space<vmem>>, vector<1x128x128xbf16>
    %66 = vector.shape_cast %65 : vector<1x128x128xbf16> to vector<128x128xbf16>
    %cst_54 = arith.constant dense<0.000000e+00> : vector<32x128xf32>
    %67 = tpu.matmul %64, %66, %cst_54 {dimension_numbers = #tpu.dot_dimension_numbers<[1], [0], [0], [1], [0, 0, 1, 1], [], []>} : vector<32x128xbf16>, vector<128x128xbf16>, vector<32x128xf32> -> vector<32x128xf32>
    %68 = arith.addf %62, %67 : vector<32x128xf32>
    %69 = vector.broadcast %6 : vector<1x128xf32> to vector<32x128xf32>
    %70 = arith.addf %68, %69 : vector<32x128xf32>
    %cst_55 = arith.constant 0.000000e+00 : f32
    %71 = vector.broadcast %cst_55 : f32 to vector<32x128xf32>
    %72 = arith.maximumf %70, %71 : vector<32x128xf32>
    %c0_56 = arith.constant 0 : index
    %c0_57 = arith.constant 0 : index
    %c0_58 = arith.constant 0 : index
    %73 = vector.load %arg9[%c0_56, %c0_57, %c0_58] : memref<1x32x128xf32, #tpu.memory_space<vmem>>, vector<1x32x128xf32>
    %74 = vector.shape_cast %73 : vector<1x32x128xf32> to vector<32x128xf32>
    %75 = vector.shape_cast %72 : vector<32x128xf32> to vector<1x32x128xf32>
    tpu.vector_store %arg9[%c0_56, %c0_57, %c0_58], %75 {strides = array<i32>} : memref<1x32x128xf32, #tpu.memory_space<vmem>>, vector<1x32x128xf32>,
    return
  }
  func.func @transform_0(%arg0: i32) -> (i32, i32, i32) {
    %c0_i32 = arith.constant 0 : i32
    %c0_i32_0 = arith.constant 0 : i32
    %c0_i32_1 = arith.constant 0 : i32
    return %arg0, %c0_i32, %c0_i32_0 : i32, i32, i32
  }
  func.func @transform_1(%arg0: i32) -> (i32, i32, i32) {
    %c0_i32 = arith.constant 0 : i32
    %c0_i32_0 = arith.constant 0 : i32
    %c0_i32_1 = arith.constant 0 : i32
    return %arg0, %c0_i32, %c0_i32_0 : i32, i32, i32
  }
  func.func @transform_2(%arg0: i32) -> (i32, i32, i32) {
    %c0_i32 = arith.constant 0 : i32
    %c0_i32_0 = arith.constant 0 : i32
    %c0_i32_1 = arith.constant 0 : i32
    return %arg0, %c0_i32, %c0_i32_0 : i32, i32, i32
  }
  func.func @transform_3(%arg0: i32) -> (i32, i32, i32) {
    %c0_i32 = arith.constant 0 : i32
    %c0_i32_0 = arith.constant 0 : i32
    %c0_i32_1 = arith.constant 0 : i32
    return %arg0, %c0_i32, %c0_i32_0 : i32, i32, i32
  }
  func.func @transform_4(%arg0: i32) -> (i32, i32, i32) {
    %c0_i32 = arith.constant 0 : i32
    %c0_i32_0 = arith.constant 0 : i32
    %c0_i32_1 = arith.constant 0 : i32
    return %arg0, %c0_i32, %c0_i32_0 : i32, i32, i32
  }
  func.func @transform_5(%arg0: i32) -> (i32, i32, i32) {
    %c0_i32 = arith.constant 0 : i32
    %c0_i32_0 = arith.constant 0 : i32
    %c0_i32_1 = arith.constant 0 : i32
    return %arg0, %c0_i32, %c0_i32_0 : i32, i32, i32
  }
  func.func @transform_6(%arg0: i32) -> (i32, i32, i32) {
    %c0_i32 = arith.constant 0 : i32
    %c0_i32_0 = arith.constant 0 : i32
    %c0_i32_1 = arith.constant 0 : i32
    return %arg0, %c0_i32, %c0_i32_0 : i32, i32, i32
  }
  func.func @transform_7(%arg0: i32) -> (i32, i32, i32) {
    %c0_i32 = arith.constant 0 : i32
    %c0_i32_0 = arith.constant 0 : i32
    %c0_i32_1 = arith.constant 0 : i32
    return %arg0, %c0_i32, %c0_i32_0 : i32, i32, i32
  }
  func.func @transform_8(%arg0: i32) -> (i32, i32, i32) {
    %c0_i32 = arith.constant 0 : i32
    %c0_i32_0 = arith.constant 0 : i32
    %c0_i32_1 = arith.constant 0 : i32
    return %arg0, %c0_i32, %c0_i32_0 : i32, i32, i32
  }
}

</mosaic_0001>

<llo_original>
// kernel: tpu_custom_call.1
$region0: #{tpu_custom_call.1}
  #allocation0 [shape = 'u32[]', space=smem, size = 0x4, offset = 0x4, fixed_abs, tag = 'smem constant byte address 0x4 - core index']
  #allocation1 [shape = 'u32[72,128]{1,0:T(1,128)}', space=vmem, size = 0x9000, scoped, tag = 'internal scratch']
  %s0 = inlined_call_operand.hbm [shape: bf16[2,32,128], index: 0, kind: input, shape index: {}]
  %s1 = inlined_call_operand.hbm [shape: bf16[2,32,32], index: 1, kind: input, shape index: {}]
  %s2 = inlined_call_operand.hbm [shape: bf16[2,32,128], index: 2, kind: input, shape index: {}]
  %s3 = inlined_call_operand.hbm [shape: bf16[2,128,128], index: 3, kind: input, shape index: {}]
  %s4 = inlined_call_operand.hbm [shape: bf16[2,128,128], index: 4, kind: input, shape index: {}]
  %s5 = inlined_call_operand.hbm [shape: bf16[2,256,128], index: 5, kind: input, shape index: {}]
  %s6 = inlined_call_operand.hbm [shape: bf16[2,256,128], index: 6, kind: input, shape index: {}]
  %s7 = inlined_call_operand.hbm [shape: f32[2,8,128], index: 7, kind: input, shape index: {}]
  %s8 = inlined_call_operand.hbm [shape: f32[2,32,128], index: 8, kind: output, shape index: {}]
  %s9 = sld [smem:[#allocation0]]
  $region97: #{tpu_custom_call.1} parent=0
    _
  %s11 = ssub.s32 1, %s9
  %s12 = scalar_select 0, %s11, %s9
  $region1: #{tpu_custom_call.1} parent=0
    #allocation2 [shape = 'u8[16384]{0}', space=vmem, size = 0x4000, scoped, tag = 'input window, operand 0']
    #allocation3 [shape = 's32[2]{0}', space=sflag, size = 0x8, scoped, tag = 'scoped memory for tpu_custom_call.1']
    #allocation4 [shape = 's32[2]{0}', space=sflag, size = 0x8, scoped, tag = 'scoped memory for tpu_custom_call.1']
    #allocation5 [shape = 'u8[16384]{0}', space=vmem, size = 0x4000, scoped, tag = 'input window, operand 1']
    #allocation6 [shape = 's32[2]{0}', space=sflag, size = 0x8, scoped, tag = 'scoped memory for tpu_custom_call.1']
    #allocation7 [shape = 'u8[16384]{0}', space=vmem, size = 0x4000, scoped, tag = 'input window, operand 2']
    #allocation8 [shape = 'u8[65536]{0}', space=vmem, size = 0x10000, scoped, tag = 'input window, operand 3']
    #allocation9 [shape = 's32[2]{0}', space=sflag, size = 0x8, scoped, tag = 'scoped memory for tpu_custom_call.1']
    #allocation10 [shape = 'u8[65536]{0}', space=vmem, size = 0x10000, scoped, tag = 'input window, operand 4']
    #allocation11 [shape = 'u8[131072]{0}', space=vmem, size = 0x20000, scoped, tag = 'input window, operand 5']
    #allocation12 [shape = 's32[2]{0}', space=sflag, size = 0x8, scoped, tag = 'scoped memory for tpu_custom_call.1']
    #allocation13 [shape = 'u8[131072]{0}', space=vmem, size = 0x20000, scoped, tag = 'input window, operand 6']
    #allocation14 [shape = 'u8[8192]{0}', space=vmem, size = 0x2000, scoped, tag = 'input window, operand 7']
    #allocation15 [shape = 's32[2]{0}', space=sflag, size = 0x8, scoped, tag = 'scoped memory for tpu_custom_call.1']
    #allocation16 [shape = 'u8[32768]{0}', space=vmem, size = 0x8000, scoped, tag = 'output window, operand 0']
    %13 = vsyncpa [#allocation3], 0
    %s14 = scalar_lea.sflag [#allocation3], 1
    %15 = vsyncpa %s14, 0
    %16 = vsyncpa [#allocation6], 0
    %s17 = scalar_lea.sflag [#allocation6], 1
    %18 = vsyncpa %s17, 0
    %19 = vsyncpa [#allocation9], 0
    %s20 = scalar_lea.sflag [#allocation9], 1
    %21 = vsyncpa %s20, 0
    %22 = vsyncpa [#allocation12], 0
    %s23 = scalar_lea.sflag [#allocation12], 1
    %24 = vsyncpa %s23, 0
    %25 = vsyncpa [#allocation15], 0
    %s26 = scalar_lea.sflag [#allocation15], 1
    %27 = vsyncpa %s26, 0
    %28 = vsyncpa [#allocation4], 0
    %s29 = scalar_lea.sflag [#allocation4], 1
    %30 = vsyncpa %s29, 0
    loop: start=0, step=1, limit=4
    $region2: #{tpu_custom_call.1} parent=1 // loop_pre_header
      _
    $region3: #{tpu_custom_call.1} parent=1 // loop_header
      %s32 = sphi 0, %s36
      %p33 = scmp.ge.s32.totalorder %s32, 4
      %s42 = sphi 0, %s44
      %s45 = sphi 0, %s42
      %s46 = sphi 0, %s45
      %s62 = sphi 0, %s46
      %s68 = sphi 0, %s70
      %s71 = sphi 0, %s68
      %s72 = sphi 0, %s71
      %s88 = sphi 0, %s72
      %s94 = sphi 0, %s96
      %s97 = sphi 0, %s94
      %s98 = sphi 0, %s97
      %s114 = sphi 0, %s98
      %s120 = sphi 0, %s122
      %s123 = sphi 0, %s120
      %s124 = sphi 0, %s123
      %s140 = sphi 0, %s124
      %s146 = sphi 0, %s148
      %s149 = sphi 0, %s146
      %s150 = sphi 0, %s149
      %s166 = sphi 0, %s150
      %s172 = sphi 0, %s174
      %s175 = sphi 0, %s172
      %s176 = sphi 0, %s175
      %s192 = sphi 0, %s176
      %s198 = sphi 0, %s200
      %s201 = sphi 0, %s198
      %s202 = sphi 0, %s201
      %s218 = sphi 0, %s202
      %s224 = sphi 0, %s226
      %s227 = sphi 0, %s224
      %s228 = sphi 0, %s227
      %s244 = sphi 0, %s228
      %s250 = sphi 0, %s252
      %s253 = sphi 0, %s250
      %s254 = sphi 0, %s253
      %s270 = sphi 0, %s254
    $region4: #{tpu_custom_call.1} parent=1 // loop_header_branch
      %35 = sbr.rel (%p33) target = $region8
    $region5: #{tpu_custom_call.1} parent=1 // loop_body
      %s37 = ssub.s32 %s32, 1
      %s38 = ssub.s32 %s32, 2
      %s39 = sadd.s32 %s32, 1
      %s40 = ssub.s32 %s32, %s39
      %p41 = scmp.eq.s32.totalorder %s40, 0
      %s43 = sadd.s32 %s42, 1
      %s44 = scalar_select %p41, %s42, %s43
      %p47 = pneg %p41
      %p48 = scmp.eq.s32.totalorder %s32, 1
      %p49 = por %p47, %p48
      %p50 = scmp.ne.s32.totalorder %s42, %s45
      %p51 = scmp.eq.s32.totalorder %s32, 0
      %p52 = por %p50, %p51
      %p53 = scmp.ne.s32.totalorder %s42, %s45
      %p54 = scmp.eq.s32.totalorder %s37, 1
      %p55 = por %p53, %p54
      %p56 = scmp.ne.s32.totalorder %s45, %s46
      %p57 = scmp.eq.s32.totalorder %s37, 0
      %p58 = por %p56, %p57
      %p59 = scmp.ne.s32.totalorder %s45, %s46
      %p60 = scmp.eq.s32.totalorder %s38, 1
      %p61 = por %p59, %p60
      %p63 = scmp.ne.s32.totalorder %s46, %s62
      %p64 = scmp.eq.s32.totalorder %s38, 0
      %p65 = por %p63, %p64
      %s66 = ssub.s32 %s32, %s39
      %p67 = scmp.eq.s32.totalorder %s66, 0
      %s69 = sadd.s32 %s68, 1
      %s70 = scalar_select %p67, %s68, %s69
      %p73 = pneg %p67
      %p74 = scmp.eq.s32.totalorder %s32, 1
      %p75 = por %p73, %p74
      %p76 = scmp.ne.s32.totalorder %s68, %s71
      %p77 = scmp.eq.s32.totalorder %s32, 0
      %p78 = por %p76, %p77
      %p79 = scmp.ne.s32.totalorder %s68, %s71
      %p80 = scmp.eq.s32.totalorder %s37, 1
      %p81 = por %p79, %p80
      %p82 = scmp.ne.s32.totalorder %s71, %s72
      %p83 = scmp.eq.s32.totalorder %s37, 0
      %p84 = por %p82, %p83
      %p85 = scmp.ne.s32.totalorder %s71, %s72
      %p86 = scmp.eq.s32.totalorder %s38, 1
      %p87 = por %p85, %p86
      %p89 = scmp.ne.s32.totalorder %s72, %s88
      %p90 = scmp.eq.s32.totalorder %s38, 0
      %p91 = por %p89, %p90
      %s92 = ssub.s32 %s32, %s39
      %p93 = scmp.eq.s32.totalorder %s92, 0
      %s95 = sadd.s32 %s94, 1
      %s96 = scalar_select %p93, %s94, %s95
      %p99 = pneg %p93
      %p100 = scmp.eq.s32.totalorder %s32, 1
      %p101 = por %p99, %p100
      %p102 = scmp.ne.s32.totalorder %s94, %s97
      %p103 = scmp.eq.s32.totalorder %s32, 0
      %p104 = por %p102, %p103
      %p105 = scmp.ne.s32.totalorder %s94, %s97
      %p106 = scmp.eq.s32.totalorder %s37, 1
      %p107 = por %p105, %p106
      %p108 = scmp.ne.s32.totalorder %s97, %s98
      %p109 = scmp.eq.s32.totalorder %s37, 0
      %p110 = por %p108, %p109
      %p111 = scmp.ne.s32.totalorder %s97, %s98
      %p112 = scmp.eq.s32.totalorder %s38, 1
      %p113 = por %p111, %p112
      %p115 = scmp.ne.s32.totalorder %s98, %s114
      %p116 = scmp.eq.s32.totalorder %s38, 0
      %p117 = por %p115, %p116
      %s118 = ssub.s32 %s32, %s39
      %p119 = scmp.eq.s32.totalorder %s118, 0
      %s121 = sadd.s32 %s120, 1
      %s122 = scalar_select %p119, %s120, %s121
      %p125 = pneg %p119
      %p126 = scmp.eq.s32.totalorder %s32, 1
      %p127 = por %p125, %p126
      %p128 = scmp.ne.s32.totalorder %s120, %s123
      %p129 = scmp.eq.s32.totalorder %s32, 0
      %p130 = por %p128, %p129
      %p131 = scmp.ne.s32.totalorder %s120, %s123
      %p132 = scmp.eq.s32.totalorder %s37, 1
      %p133 = por %p131, %p132
      %p134 = scmp.ne.s32.totalorder %s123, %s124
      %p135 = scmp.eq.s32.totalorder %s37, 0
      %p136 = por %p134, %p135
      %p137 = scmp.ne.s32.totalorder %s123, %s124
      %p138 = scmp.eq.s32.totalorder %s38, 1
      %p139 = por %p137, %p138
      %p141 = scmp.ne.s32.totalorder %s124, %s140
      %p142 = scmp.eq.s32.totalorder %s38, 0
      %p143 = por %p141, %p142
      %s144 = ssub.s32 %s32, %s39
      %p145 = scmp.eq.s32.totalorder %s144, 0
      %s147 = sadd.s32 %s146, 1
      %s148 = scalar_select %p145, %s146, %s147
      %p151 = pneg %p145
      %p152 = scmp.eq.s32.totalorder %s32, 1
      %p153 = por %p151, %p152
      %p154 = scmp.ne.s32.totalorder %s146, %s149
      %p155 = scmp.eq.s32.totalorder %s32, 0
      %p156 = por %p154, %p155
      %p157 = scmp.ne.s32.totalorder %s146, %s149
      %p158 = scmp.eq.s32.totalorder %s37, 1
      %p159 = por %p157, %p158
      %p160 = scmp.ne.s32.totalorder %s149, %s150
      %p161 = scmp.eq.s32.totalorder %s37, 0
      %p162 = por %p160, %p161
      %p163 = scmp.ne.s32.totalorder %s149, %s150
      %p164 = scmp.eq.s32.totalorder %s38, 1
      %p165 = por %p163, %p164
      %p167 = scmp.ne.s32.totalorder %s150, %s166
      %p168 = scmp.eq.s32.totalorder %s38, 0
      %p169 = por %p167, %p168
      %s170 = ssub.s32 %s32, %s39
      %p171 = scmp.eq.s32.totalorder %s170, 0
      %s173 = sadd.s32 %s172, 1
      %s174 = scalar_select %p171, %s172, %s173
      %p177 = pneg %p171
      %p178 = scmp.eq.s32.totalorder %s32, 1
      %p179 = por %p177, %p178
      %p180 = scmp.ne.s32.totalorder %s172, %s175
      %p181 = scmp.eq.s32.totalorder %s32, 0
      %p182 = por %p180, %p181
      %p183 = scmp.ne.s32.totalorder %s172, %s175
      %p184 = scmp.eq.s32.totalorder %s37, 1
      %p185 = por %p183, %p184
      %p186 = scmp.ne.s32.totalorder %s175, %s176
      %p187 = scmp.eq.s32.totalorder %s37, 0
      %p188 = por %p186, %p187
      %p189 = scmp.ne.s32.totalorder %s175, %s176
      %p190 = scmp.eq.s32.totalorder %s38, 1
      %p191 = por %p189, %p190
      %p193 = scmp.ne.s32.totalorder %s176, %s192
      %p194 = scmp.eq.s32.totalorder %s38, 0
      %p195 = por %p193, %p194
      %s196 = ssub.s32 %s32, %s39
      %p197 = scmp.eq.s32.totalorder %s196, 0
      %s199 = sadd.s32 %s198, 1
      %s200 = scalar_select %p197, %s198, %s199
      %p203 = pneg %p197
      %p204 = scmp.eq.s32.totalorder %s32, 1
      %p205 = por %p203, %p204
      %p206 = scmp.ne.s32.totalorder %s198, %s201
      %p207 = scmp.eq.s32.totalorder %s32, 0
      %p208 = por %p206, %p207
      %p209 = scmp.ne.s32.totalorder %s198, %s201
      %p210 = scmp.eq.s32.totalorder %s37, 1
      %p211 = por %p209, %p210
      %p212 = scmp.ne.s32.totalorder %s201, %s202
      %p213 = scmp.eq.s32.totalorder %s37, 0
      %p214 = por %p212, %p213
      %p215 = scmp.ne.s32.totalorder %s201, %s202
      %p216 = scmp.eq.s32.totalorder %s38, 1
      %p217 = por %p215, %p216
      %p219 = scmp.ne.s32.totalorder %s202, %s218
      %p220 = scmp.eq.s32.totalorder %s38, 0
      %p221 = por %p219, %p220
      %s222 = ssub.s32 %s32, %s39
      %p223 = scmp.eq.s32.totalorder %s222, 0
      %s225 = sadd.s32 %s224, 1
      %s226 = scalar_select %p223, %s224, %s225
      %p229 = pneg %p223
      %p230 = scmp.eq.s32.totalorder %s32, 1
      %p231 = por %p229, %p230
      %p232 = scmp.ne.s32.totalorder %s224, %s227
      %p233 = scmp.eq.s32.totalorder %s32, 0
      %p234 = por %p232, %p233
      %p235 = scmp.ne.s32.totalorder %s224, %s227
      %p236 = scmp.eq.s32.totalorder %s37, 1
      %p237 = por %p235, %p236
      %p238 = scmp.ne.s32.totalorder %s227, %s228
      %p239 = scmp.eq.s32.totalorder %s37, 0
      %p240 = por %p238, %p239
      %p241 = scmp.ne.s32.totalorder %s227, %s228
      %p242 = scmp.eq.s32.totalorder %s38, 1
      %p243 = por %p241, %p242
      %p245 = scmp.ne.s32.totalorder %s228, %s244
      %p246 = scmp.eq.s32.totalorder %s38, 0
      %p247 = por %p245, %p246
      %s248 = ssub.s32 %s32, %s39
      %p249 = scmp.eq.s32.totalorder %s248, 0
      %s251 = sadd.s32 %s250, 1
      %s252 = scalar_select %p249, %s250, %s251
      %p255 = pneg %p249
      %p256 = scmp.eq.s32.totalorder %s32, 1
      %p257 = por %p255, %p256
      %p258 = scmp.ne.s32.totalorder %s250, %s253
      %p259 = scmp.eq.s32.totalorder %s32, 0
      %p260 = por %p258, %p259
      %p261 = scmp.ne.s32.totalorder %s250, %s253
      %p262 = scmp.eq.s32.totalorder %s37, 1
      %p263 = por %p261, %p262
      %p264 = scmp.ne.s32.totalorder %s253, %s254
      %p265 = scmp.eq.s32.totalorder %s37, 0
      %p266 = por %p264, %p265
      %p267 = scmp.ne.s32.totalorder %s253, %s254
      %p268 = scmp.eq.s32.totalorder %s38, 1
      %p269 = por %p267, %p268
      %p271 = scmp.ne.s32.totalorder %s254, %s270
      %p272 = scmp.eq.s32.totalorder %s38, 0
      %p273 = por %p271, %p272
      %p274 = scmp.le.s32.totalorder 1, %s32
      %p275 = scmp.lt.s32.totalorder %s32, 3
      %p276 = pnand %p274, %p275
      %p277 = pneg %p276
      // Predicated region
      $region9: #{tpu_custom_call.1} parent=5 // pred_check
        _
      $region10: #{tpu_custom_call.1} parent=5 // pred_check_branch
        %279 = sbr.rel (%p276) target = $region12
      $region11: #{tpu_custom_call.1} parent=5 // pred_region
        %s280 = ssub.s32 %s32, 1
      $region12: #{tpu_custom_call.1} parent=5 // pred_fallthru
        _
      %p281 = scmp.lt.s32.totalorder %s32, 2
      // Predicated region
      $region13: #{tpu_custom_call.1} parent=5 // pred_check
        %p282 = pneg %p281
      $region14: #{tpu_custom_call.1} parent=5 // pred_check_branch
        %284 = sbr.rel (%p282) target = $region16
      $region15: #{tpu_custom_call.1} parent=5 // pred_region
        // Predicated region
        $region17: #{tpu_custom_call.1} parent=15 // pred_check
          %p285 = pneg %p52
        $region18: #{tpu_custom_call.1} parent=15 // pred_check_branch
          %287 = sbr.rel (%p285) target = $region20
        $region19: #{tpu_custom_call.1} parent=15 // pred_region
          %s288 = sand.u32 %s42, 1
          %s289 = scalar_lea.sflag [#allocation3], %s288
          %s290 = sand.u32 %s42, 1
          %s291 = smul.addr %s290, 16
          %s292 = scalar_lea.vmem [#allocation2], %s291
          %294 = vsyncadd %s289, 0
          %s295 = smul.addr %s32, 4
          %s296 = smul.addr %s295, 4
          %s297 = scalar_lea.hbm %s0, %s296
          %s298 = sshll.u32 %s297, 4
          %s299 = int_to_ptr.hbm [resolvable:$true] %s298
          %s300 = sshll.u32 %s292, 4
          %s301 = int_to_ptr.vmem [resolvable:$true] %s300
          %306 = dma.hbm_to_vmem [thread:$0]  %s299, 256, %s301, %s289, 64, 64, 4
        $region20: #{tpu_custom_call.1} parent=15 // pred_fallthru
          _
        // Predicated region
        $region21: #{tpu_custom_call.1} parent=15 // pred_check
          %p307 = pneg %p78
        $region22: #{tpu_custom_call.1} parent=15 // pred_check_branch
          %309 = sbr.rel (%p307) target = $region24
        $region23: #{tpu_custom_call.1} parent=15 // pred_region
          %s310 = sand.u32 %s32, 1
          %s311 = scalar_lea.sflag [#allocation6], %s310
          %s312 = sand.u32 %s68, 1
          %s313 = smul.addr %s312, 16
          %s314 = scalar_lea.vmem [#allocation5], %s313
          %316 = vsyncadd %s311, 0
          %s317 = smul.addr %s32, 4
          %s318 = smul.addr %s317, 4
          %s319 = scalar_lea.hbm %s1, %s318
          %s320 = sshll.u32 %s319, 4
          %s321 = int_to_ptr.hbm [resolvable:$true] %s320
          %s322 = sshll.u32 %s314, 4
          %s323 = int_to_ptr.vmem [resolvable:$true] %s322
          %328 = dma.hbm_to_vmem [thread:$0]  %s321, 256, %s323, %s311, 64, 64, 4
        $region24: #{tpu_custom_call.1} parent=15 // pred_fallthru
          _
        // Predicated region
        $region25: #{tpu_custom_call.1} parent=15 // pred_check
          %p329 = pneg %p104
        $region26: #{tpu_custom_call.1} parent=15 // pred_check_branch
          %331 = sbr.rel (%p329) target = $region28
        $region27: #{tpu_custom_call.1} parent=15 // pred_region
          %s332 = sand.u32 %s32, 1
          %s333 = scalar_lea.sflag [#allocation6], %s332
          %s334 = sand.u32 %s94, 1
          %s335 = smul.addr %s334, 16
          %s336 = scalar_lea.vmem [#allocation7], %s335
          %338 = vsyncadd %s333, 0
          %s339 = smul.addr %s32, 4
          %s340 = smul.addr %s339, 4
          %s341 = scalar_lea.hbm %s2, %s340
          %s342 = sshll.u32 %s341, 4
          %s343 = int_to_ptr.hbm [resolvable:$true] %s342
          %s344 = sshll.u32 %s336, 4
          %s345 = int_to_ptr.vmem [resolvable:$true] %s344
          %350 = dma.hbm_to_vmem [thread:$0]  %s343, 256, %s345, %s333, 64, 64, 4
        $region28: #{tpu_custom_call.1} parent=15 // pred_fallthru
          _
        // Predicated region
        $region29: #{tpu_custom_call.1} parent=15 // pred_check
          %p351 = pneg %p130
        $region30: #{tpu_custom_call.1} parent=15 // pred_check_branch
          %353 = sbr.rel (%p351) target = $region32
        $region31: #{tpu_custom_call.1} parent=15 // pred_region
          %s354 = sand.u32 %s32, 1
          %s355 = scalar_lea.sflag [#allocation9], %s354
          %s356 = sand.u32 %s120, 1
          %s357 = smul.addr %s356, 64
          %s358 = scalar_lea.vmem [#allocation8], %s357
          %360 = vsyncadd %s355, 0
          %s361 = smul.addr %s32, 16
          %s362 = smul.addr %s361, 4
          %s363 = scalar_lea.hbm %s3, %s362
          %s364 = sshll.u32 %s363, 4
          %s365 = int_to_ptr.hbm [resolvable:$true] %s364
          %s366 = sshll.u32 %s358, 4
          %s367 = int_to_ptr.vmem [resolvable:$true] %s366
          %372 = dma.hbm_to_vmem [thread:$0]  %s365, 1024, %s367, %s355, 64, 64, 4
        $region32: #{tpu_custom_call.1} parent=15 // pred_fallthru
          _
        // Predicated region
        $region33: #{tpu_custom_call.1} parent=15 // pred_check
          %p373 = pneg %p156
        $region34: #{tpu_custom_call.1} parent=15 // pred_check_branch
          %375 = sbr.rel (%p373) target = $region36
        $region35: #{tpu_custom_call.1} parent=15 // pred_region
          %s376 = sand.u32 %s32, 1
          %s377 = scalar_lea.sflag [#allocation9], %s376
          %s378 = sand.u32 %s146, 1
          %s379 = smul.addr %s378, 64
          %s380 = scalar_lea.vmem [#allocation10], %s379
          %382 = vsyncadd %s377, 0
          %s383 = smul.addr %s32, 16
          %s384 = smul.addr %s383, 4
          %s385 = scalar_lea.hbm %s4, %s384
          %s386 = sshll.u32 %s385, 4
          %s387 = int_to_ptr.hbm [resolvable:$true] %s386
          %s388 = sshll.u32 %s380, 4
          %s389 = int_to_ptr.vmem [resolvable:$true] %s388
          %394 = dma.hbm_to_vmem [thread:$0]  %s387, 1024, %s389, %s377, 64, 64, 4
        $region36: #{tpu_custom_call.1} parent=15 // pred_fallthru
          _
        // Predicated region
        $region37: #{tpu_custom_call.1} parent=15 // pred_check
          %p395 = pneg %p182
        $region38: #{tpu_custom_call.1} parent=15 // pred_check_branch
          %397 = sbr.rel (%p395) target = $region40
        $region39: #{tpu_custom_call.1} parent=15 // pred_region
          %s398 = sand.u32 %s32, 1
          %s399 = scalar_lea.sflag [#allocation12], %s398
          %s400 = sand.u32 %s172, 1
          %s401 = smul.addr %s400, 128
          %s402 = scalar_lea.vmem [#allocation11], %s401
          %404 = vsyncadd %s399, 0
          %s405 = smul.addr %s32, 32
          %s406 = smul.addr %s405, 4
          %s407 = scalar_lea.hbm %s5, %s406
          %s408 = sshll.u32 %s407, 4
          %s409 = int_to_ptr.hbm [resolvable:$true] %s408
          %s410 = sshll.u32 %s402, 4
          %s411 = int_to_ptr.vmem [resolvable:$true] %s410
          %416 = dma.hbm_to_vmem [thread:$0]  %s409, 2048, %s411, %s399, 64, 64, 4
        $region40: #{tpu_custom_call.1} parent=15 // pred_fallthru
          _
        // Predicated region
        $region41: #{tpu_custom_call.1} parent=15 // pred_check
          %p417 = pneg %p208
        $region42: #{tpu_custom_call.1} parent=15 // pred_check_branch
          %419 = sbr.rel (%p417) target = $region44
        $region43: #{tpu_custom_call.1} parent=15 // pred_region
          %s420 = sand.u32 %s32, 1
          %s421 = scalar_lea.sflag [#allocation12], %s420
          %s422 = sand.u32 %s198, 1
          %s423 = smul.addr %s422, 128
          %s424 = scalar_lea.vmem [#allocation13], %s423
          %426 = vsyncadd %s421, 0
          %s427 = smul.addr %s32, 32
          %s428 = smul.addr %s427, 4
          %s429 = scalar_lea.hbm %s6, %s428
          %s430 = sshll.u32 %s429, 4
          %s431 = int_to_ptr.hbm [resolvable:$true] %s430
          %s432 = sshll.u32 %s424, 4
          %s433 = int_to_ptr.vmem [resolvable:$true] %s432
          %438 = dma.hbm_to_vmem [thread:$0]  %s431, 2048, %s433, %s421, 64, 64, 4
        $region44: #{tpu_custom_call.1} parent=15 // pred_fallthru
          _
        // Predicated region
        $region45: #{tpu_custom_call.1} parent=15 // pred_check
          %p439 = pneg %p234
        $region46: #{tpu_custom_call.1} parent=15 // pred_check_branch
          %441 = sbr.rel (%p439) target = $region48
        $region47: #{tpu_custom_call.1} parent=15 // pred_region
          %s442 = sand.u32 %s224, 1
          %s443 = scalar_lea.sflag [#allocation15], %s442
          %s444 = sand.u32 %s224, 1
          %s445 = smul.addr %s444, 8
          %s446 = scalar_lea.vmem [#allocation14], %s445
          %448 = vsyncadd %s443, 0
          %s449 = smul.addr %s32, 8
          %s450 = scalar_lea.hbm %s7, %s449
          %s452 = sshll.u32 %s450, 4
          %s453 = int_to_ptr.hbm [resolvable:$true] %s452
          %s454 = sshll.u32 %s446, 4
          %s455 = int_to_ptr.vmem [resolvable:$true] %s454
          %457 = dma.hbm_to_vmem [thread:$0]  %s453, 128, %s455, %s443
        $region48: #{tpu_custom_call.1} parent=15 // pred_fallthru
          _
      $region16: #{tpu_custom_call.1} parent=5 // pred_fallthru
        _
      %p458 = scmp.le.s32.totalorder 1, %s32
      %p459 = scmp.lt.s32.totalorder %s32, 3
      %p460 = pnand %p458, %p459
      %p461 = pneg %p460
      // Predicated region
      $region49: #{tpu_custom_call.1} parent=5 // pred_check
        _
      $region50: #{tpu_custom_call.1} parent=5 // pred_check_branch
        %463 = sbr.rel (%p460) target = $region52
      $region51: #{tpu_custom_call.1} parent=5 // pred_region
        %s464 = ssub.s32 %s32, 1
        %s465 = sand.u32 %s45, 1
        %s466 = scalar_lea.sflag [#allocation3], %s465
        %s467 = sand.u32 %s45, 1
        %s468 = smul.addr %s467, 16
        %s469 = scalar_lea.vmem [#allocation2], %s468
        // Predicated region
        $region53: #{tpu_custom_call.1} parent=51 // pred_check
          %p470 = pneg %p58
        $region54: #{tpu_custom_call.1} parent=51 // pred_check_branch
          %472 = sbr.rel (%p470) target = $region56
        $region55: #{tpu_custom_call.1} parent=51 // pred_region
          %474 = dma.done %s466, 256
        $region56: #{tpu_custom_call.1} parent=51 // pred_fallthru
          _
        %s475 = sand.u32 %s37, 1
        %s476 = scalar_lea.sflag [#allocation6], %s475
        %s477 = sand.u32 %s71, 1
        %s478 = smul.addr %s477, 16
        %s479 = scalar_lea.vmem [#allocation5], %s478
        // Predicated region
        $region57: #{tpu_custom_call.1} parent=51 // pred_check
          %p480 = pneg %p84
        $region58: #{tpu_custom_call.1} parent=51 // pred_check_branch
          %482 = sbr.rel (%p480) target = $region60
        $region59: #{tpu_custom_call.1} parent=51 // pred_region
          %484 = dma.done %s476, 256
        $region60: #{tpu_custom_call.1} parent=51 // pred_fallthru
          _
        %s485 = sand.u32 %s37, 1
        %s486 = scalar_lea.sflag [#allocation6], %s485
        %s487 = sand.u32 %s97, 1
        %s488 = smul.addr %s487, 16
        %s489 = scalar_lea.vmem [#allocation7], %s488
        // Predicated region
        $region61: #{tpu_custom_call.1} parent=51 // pred_check
          %p490 = pneg %p110
        $region62: #{tpu_custom_call.1} parent=51 // pred_check_branch
          %492 = sbr.rel (%p490) target = $region64
        $region63: #{tpu_custom_call.1} parent=51 // pred_region
          %494 = dma.done %s486, 256
        $region64: #{tpu_custom_call.1} parent=51 // pred_fallthru
          _
        %s495 = sand.u32 %s37, 1
        %s496 = scalar_lea.sflag [#allocation9], %s495
        %s497 = sand.u32 %s123, 1
        %s498 = smul.addr %s497, 64
        %s499 = scalar_lea.vmem [#allocation8], %s498
        // Predicated region
        $region65: #{tpu_custom_call.1} parent=51 // pred_check
          %p500 = pneg %p136
        $region66: #{tpu_custom_call.1} parent=51 // pred_check_branch
          %502 = sbr.rel (%p500) target = $region68
        $region67: #{tpu_custom_call.1} parent=51 // pred_region
          %504 = dma.done %s496, 1024
        $region68: #{tpu_custom_call.1} parent=51 // pred_fallthru
          _
        %s505 = sand.u32 %s37, 1
        %s506 = scalar_lea.sflag [#allocation9], %s505
        %s507 = sand.u32 %s149, 1
        %s508 = smul.addr %s507, 64
        %s509 = scalar_lea.vmem [#allocation10], %s508
        // Predicated region
        $region69: #{tpu_custom_call.1} parent=51 // pred_check
          %p510 = pneg %p162
        $region70: #{tpu_custom_call.1} parent=51 // pred_check_branch
          %512 = sbr.rel (%p510) target = $region72
        $region71: #{tpu_custom_call.1} parent=51 // pred_region
          %514 = dma.done %s506, 1024
        $region72: #{tpu_custom_call.1} parent=51 // pred_fallthru
          _
        %s515 = sand.u32 %s37, 1
        %s516 = scalar_lea.sflag [#allocation12], %s515
        %s517 = sand.u32 %s175, 1
        %s518 = smul.addr %s517, 128
        %s519 = scalar_lea.vmem [#allocation11], %s518
        // Predicated region
        $region73: #{tpu_custom_call.1} parent=51 // pred_check
          %p520 = pneg %p188
        $region74: #{tpu_custom_call.1} parent=51 // pred_check_branch
          %522 = sbr.rel (%p520) target = $region76
        $region75: #{tpu_custom_call.1} parent=51 // pred_region
          %524 = dma.done %s516, 2048
        $region76: #{tpu_custom_call.1} parent=51 // pred_fallthru
          _
        %s525 = sand.u32 %s37, 1
        %s526 = scalar_lea.sflag [#allocation12], %s525
        %s527 = sand.u32 %s201, 1
        %s528 = smul.addr %s527, 128
        %s529 = scalar_lea.vmem [#allocation13], %s528
        // Predicated region
        $region77: #{tpu_custom_call.1} parent=51 // pred_check
          %p530 = pneg %p214
        $region78: #{tpu_custom_call.1} parent=51 // pred_check_branch
          %532 = sbr.rel (%p530) target = $region80
        $region79: #{tpu_custom_call.1} parent=51 // pred_region
          %534 = dma.done %s526, 2048
        $region80: #{tpu_custom_call.1} parent=51 // pred_fallthru
          _
        %s535 = sand.u32 %s227, 1
        %s536 = scalar_lea.sflag [#allocation15], %s535
        %s537 = sand.u32 %s227, 1
        %s538 = smul.addr %s537, 8
        %s539 = scalar_lea.vmem [#allocation14], %s538
        // Predicated region
        $region81: #{tpu_custom_call.1} parent=51 // pred_check
          %p540 = pneg %p240
        $region82: #{tpu_custom_call.1} parent=51 // pred_check_branch
          %542 = sbr.rel (%p540) target = $region84
        $region83: #{tpu_custom_call.1} parent=51 // pred_region
          %544 = dma.done %s536, 128
        $region84: #{tpu_custom_call.1} parent=51 // pred_fallthru
          _
        %s545 = sand.u32 %s45, 1
        %s546 = scalar_lea.sflag [#allocation3], %s545
        %s547 = sand.u32 %s45, 1
        %s548 = smul.addr %s547, 16
        %s549 = scalar_lea.vmem [#allocation2], %s548
        %p550 = pneg %p58
        %p551 = pneg %p55
        %s552 = sand.u32 %s37, 1
        %s553 = scalar_lea.sflag [#allocation6], %s552
        %s554 = sand.u32 %s71, 1
        %s555 = smul.addr %s554, 16
        %s556 = scalar_lea.vmem [#allocation5], %s555
        %p557 = pneg %p84
        %p558 = pneg %p81
        %s559 = sand.u32 %s37, 1
        %s560 = scalar_lea.sflag [#allocation6], %s559
        %s561 = sand.u32 %s97, 1
        %s562 = smul.addr %s561, 16
        %s563 = scalar_lea.vmem [#allocation7], %s562
        %p564 = pneg %p110
        %p565 = pneg %p107
        %s566 = sand.u32 %s37, 1
        %s567 = scalar_lea.sflag [#allocation9], %s566
        %s568 = sand.u32 %s123, 1
        %s569 = smul.addr %s568, 64
        %s570 = scalar_lea.vmem [#allocation8], %s569
        %p571 = pneg %p136
        %p572 = pneg %p133
        %s573 = sand.u32 %s37, 1
        %s574 = scalar_lea.sflag [#allocation9], %s573
        %s575 = sand.u32 %s149, 1
        %s576 = smul.addr %s575, 64
        %s577 = scalar_lea.vmem [#allocation10], %s576
        %p578 = pneg %p162
        %p579 = pneg %p159
        %s580 = sand.u32 %s37, 1
        %s581 = scalar_lea.sflag [#allocation12], %s580
        %s582 = sand.u32 %s175, 1
        %s583 = smul.addr %s582, 128
        %s584 = scalar_lea.vmem [#allocation11], %s583
        %p585 = pneg %p188
        %p586 = pneg %p185
        %s587 = sand.u32 %s37, 1
        %s588 = scalar_lea.sflag [#allocation12], %s587
        %s589 = sand.u32 %s201, 1
        %s590 = smul.addr %s589, 128
        %s591 = scalar_lea.vmem [#allocation13], %s590
        %p592 = pneg %p214
        %p593 = pneg %p211
        %s594 = sand.u32 %s227, 1
        %s595 = scalar_lea.sflag [#allocation15], %s594
        %s596 = sand.u32 %s227, 1
        %s597 = smul.addr %s596, 8
        %s598 = scalar_lea.vmem [#allocation14], %s597
        %p599 = pneg %p240
        %p600 = pneg %p237
        %p601 = pneg %p266
        %p602 = pneg %p263
        %s603 = sand.u32 %s253, 1
        %s604 = scalar_lea.sflag [#allocation4], %s603
        %s605 = sand.u32 %s253, 1
        %s606 = smul.addr %s605, 32
        %s607 = scalar_lea.vmem [#allocation16], %s606
        %v609 = vld [vmem:[%s469] sm:$0xf]
        %v610 = vld [vmem:[%s469 + $0x4] sm:$0xf]
        %v611 = vld [vmem:[%s469 + $0x8] sm:$0xf]
        %v612 = vld [vmem:[%s469 + $0xc] sm:$0xf]
        %v613 = vld [vmem:[%s539] sm:$0xff]
        %v614 = vld [vmem:[%s499] sm:$0xf]
        %v615 = vld [vmem:[%s499 + $0x4] sm:$0xf]
        %v616 = vld [vmem:[%s499 + $0x8] sm:$0xf]
        %v617 = vld [vmem:[%s499 + $0xc] sm:$0xf]
        %v618 = vld [vmem:[%s499 + $0x10] sm:$0xf]
        %v619 = vld [vmem:[%s499 + $0x14] sm:$0xf]
        %v620 = vld [vmem:[%s499 + $0x18] sm:$0xf]
        %v621 = vld [vmem:[%s499 + $0x1c] sm:$0xf]
        %v622 = vld [vmem:[%s499 + $0x20] sm:$0xf]
        %v623 = vld [vmem:[%s499 + $0x24] sm:$0xf]
        %v624 = vld [vmem:[%s499 + $0x28] sm:$0xf]
        %v625 = vld [vmem:[%s499 + $0x2c] sm:$0xf]
        %v626 = vld [vmem:[%s499 + $0x30] sm:$0xf]
        %v627 = vld [vmem:[%s499 + $0x34] sm:$0xf]
        %v628 = vld [vmem:[%s499 + $0x38] sm:$0xf]
        %v629 = vld [vmem:[%s499 + $0x3c] sm:$0xf]
        %v630 = vperm.slane %v613, 0
        %v635 = vunpack.c.l.b16 %v609
        %v636 = vunpack.c.l.b16 %v610
        %v637 = vunpack.c.l.b16 %v611
        %v638 = vunpack.c.l.b16 %v612
        %v639 = vpack.c.b16 %v636, %v635
        %v640 = vpack.c.b16 %v638, %v637
        %v659 = vunpack.c.l.b16 %v614
        %v660 = vunpack.c.l.b16 %v615
        %v661 = vunpack.c.l.b16 %v616
        %v662 = vunpack.c.l.b16 %v617
        %v663 = vunpack.c.l.b16 %v618
        %v664 = vunpack.c.l.b16 %v619
        %v665 = vunpack.c.l.b16 %v620
        %v666 = vunpack.c.l.b16 %v621
        %v667 = vunpack.c.l.b16 %v622
        %v668 = vunpack.c.l.b16 %v623
        %v669 = vunpack.c.l.b16 %v624
        %v670 = vunpack.c.l.b16 %v625
        %v671 = vunpack.c.l.b16 %v626
        %v672 = vunpack.c.l.b16 %v627
        %v673 = vunpack.c.l.b16 %v628
        %v674 = vunpack.c.l.b16 %v629
        %v675 = vpack.c.b16 %v660, %v659
        %v676 = vpack.c.b16 %v662, %v661
        %v677 = vpack.c.b16 %v664, %v663
        %v678 = vpack.c.b16 %v666, %v665
        %v679 = vpack.c.b16 %v668, %v667
        %v680 = vpack.c.b16 %v670, %v669
        %v681 = vpack.c.b16 %v672, %v671
        %v682 = vpack.c.b16 %v674, %v673
        %691 = vmatpush.bf16.msra.mxu0 %v682
        %692 = vmatpush.bf16.msra.mxu0 %v681
        %693 = vmatpush.bf16.msra.mxu0 %v680
        %694 = vmatpush.bf16.msra.mxu0 %v679
        %695 = vmatpush.bf16.msra.mxu0 %v678
        %696 = vmatpush.bf16.msra.mxu0 %v677
        %697 = vmatpush.bf16.msra.mxu0 %v676
        %698 = vmatpush.bf16.msra.mxu0 %v675
        %699 = vmatmul.bf16.gmra.mxu0 %v639
        %v700 = vpop.f32.mrf.mxu0
        %v701 = vadd.f32 %v630, %v700
        %v702 = vpop.f32.mrf.mxu0
        %v703 = vadd.f32 %v630, %v702
        %704 = vmatmul.bf16.gmra.mxu0 %v640
        %v705 = vpop.f32.mrf.mxu0
        %v706 = vadd.f32 %v630, %v705
        %v707 = vpop.f32.mrf.mxu0
        %v708 = vadd.f32 %v630, %v707
        %709 = vdwg.mxu0
        %v710 = vmax.f32 %v701, 0.0
        %v711 = vmax.f32 %v703, 0.0
        %v712 = vmax.f32 %v706, 0.0
        %v713 = vmax.f32 %v708, 0.0
        %v714 = vld [vmem:[%s479] sm:$0xf]
        %v715 = vld [vmem:[%s479 + $0x4] sm:$0xf]
        %v716 = vld [vmem:[%s479 + $0x8] sm:$0xf]
        %v717 = vld [vmem:[%s479 + $0xc] sm:$0xf]
        %v718 = vpack.c.bf16 %v711, %v710
        %v719 = vpack.c.bf16 %v713, %v712
        %v724 = vunpack.c.l.b16 %v714
        %v725 = vunpack.c.l.b16 %v715
        %v726 = vunpack.c.l.b16 %v716
        %v727 = vunpack.c.l.b16 %v717
        %v728 = vpack.c.b16 %v725, %v724
        %v729 = vpack.c.b16 %v727, %v726
        %vm730 = vcmask 261120
        %v732 = vsel %vm730, %v728, 0
        %v735 = vsel %vm730, %v729, 0
        %737 = vmatpush.bf16.msra.mxu0 0
        %738 = vmatpush.bf16.msra.mxu0 0
        %739 = vmatpush.bf16.msra.mxu0 0
        %740 = vmatpush.bf16.msra.mxu0 0
        %741 = vmatpush.bf16.msra.mxu0 0
        %742 = vmatpush.bf16.msra.mxu0 0
        %743 = vmatpush.bf16.msra.mxu0 %v719
        %744 = vmatpush.bf16.msra.mxu0 %v718
        %745 = vmatmul.bf16.gmra.mxu0 %v732
        %v746 = vpop.f32.mrf.mxu0
        %v747 = vadd.f32 0.0, %v746
        %v748 = vpop.f32.mrf.mxu0
        %v749 = vadd.f32 0.0, %v748
        %750 = vmatmul.bf16.gmra.mxu0 %v735
        %v751 = vpop.f32.mrf.mxu0
        %v752 = vadd.f32 0.0, %v751
        %v753 = vpop.f32.mrf.mxu0
        %v754 = vadd.f32 0.0, %v753
        %755 = vdwg.mxu0
        %v756 = vpack.c.bf16 %v749, %v747
        %v757 = vpack.c.bf16 %v754, %v752
        %v758 = vld [vmem:[%s509] sm:$0xf]
        %v759 = vld [vmem:[%s509 + $0x4] sm:$0xf]
        %v760 = vld [vmem:[%s509 + $0x8] sm:$0xf]
        %v761 = vld [vmem:[%s509 + $0xc] sm:$0xf]
        %v762 = vld [vmem:[%s509 + $0x10] sm:$0xf]
        %v763 = vld [vmem:[%s509 + $0x14] sm:$0xf]
        %v764 = vld [vmem:[%s509 + $0x18] sm:$0xf]
        %v765 = vld [vmem:[%s509 + $0x1c] sm:$0xf]
        %v766 = vld [vmem:[%s509 + $0x20] sm:$0xf]
        %v767 = vld [vmem:[%s509 + $0x24] sm:$0xf]
        %v768 = vld [vmem:[%s509 + $0x28] sm:$0xf]
        %v769 = vld [vmem:[%s509 + $0x2c] sm:$0xf]
        %v770 = vld [vmem:[%s509 + $0x30] sm:$0xf]
        %v771 = vld [vmem:[%s509 + $0x34] sm:$0xf]
        %v772 = vld [vmem:[%s509 + $0x38] sm:$0xf]
        %v773 = vld [vmem:[%s509 + $0x3c] sm:$0xf]
        %v790 = vunpack.c.l.b16 %v758
        %v791 = vunpack.c.l.b16 %v759
        %v792 = vunpack.c.l.b16 %v760
        %v793 = vunpack.c.l.b16 %v761
        %v794 = vunpack.c.l.b16 %v762
        %v795 = vunpack.c.l.b16 %v763
        %v796 = vunpack.c.l.b16 %v764
        %v797 = vunpack.c.l.b16 %v765
        %v798 = vunpack.c.l.b16 %v766
        %v799 = vunpack.c.l.b16 %v767
        %v800 = vunpack.c.l.b16 %v768
        %v801 = vunpack.c.l.b16 %v769
        %v802 = vunpack.c.l.b16 %v770
        %v803 = vunpack.c.l.b16 %v771
        %v804 = vunpack.c.l.b16 %v772
        %v805 = vunpack.c.l.b16 %v773
        %v806 = vpack.c.b16 %v791, %v790
        %v807 = vpack.c.b16 %v793, %v792
        %v808 = vpack.c.b16 %v795, %v794
        %v809 = vpack.c.b16 %v797, %v796
        %v810 = vpack.c.b16 %v799, %v798
        %v811 = vpack.c.b16 %v801, %v800
        %v812 = vpack.c.b16 %v803, %v802
        %v813 = vpack.c.b16 %v805, %v804
        %822 = vmatpush.bf16.msra.mxu0 %v813
        %823 = vmatpush.bf16.msra.mxu0 %v812
        %824 = vmatpush.bf16.msra.mxu0 %v811
        %825 = vmatpush.bf16.msra.mxu0 %v810
        %826 = vmatpush.bf16.msra.mxu0 %v809
        %827 = vmatpush.bf16.msra.mxu0 %v808
        %828 = vmatpush.bf16.msra.mxu0 %v807
        %829 = vmatpush.bf16.msra.mxu0 %v806
        %830 = vmatmul.bf16.gmra.mxu0 %v756
        %v831 = vpop.f32.mrf.mxu0
        %v832 = vadd.f32 0.0, %v831
        %v833 = vpop.f32.mrf.mxu0
        %v834 = vadd.f32 0.0, %v833
        %835 = vmatmul.bf16.gmra.mxu0 %v757
        %v836 = vpop.f32.mrf.mxu0
        %v837 = vadd.f32 0.0, %v836
        %v838 = vpop.f32.mrf.mxu0
        %v839 = vadd.f32 0.0, %v838
        %840 = vdwg.mxu0
        %v841 = vadd.f32 %v710, %v832
        %v842 = vadd.f32 %v711, %v834
        %v843 = vadd.f32 %v712, %v837
        %v844 = vadd.f32 %v713, %v839
        %v845 = vmax.f32 %v841, 0.0
        %v846 = vmax.f32 %v842, 0.0
        %v847 = vmax.f32 %v843, 0.0
        %v848 = vmax.f32 %v844, 0.0
        %v849 = vpack.c.bf16 %v846, %v845
        %v850 = vpack.c.bf16 %v848, %v847
        %851 = vmatpush.bf16.msra.mxu0 0
        %852 = vmatpush.bf16.msra.mxu0 0
        %853 = vmatpush.bf16.msra.mxu0 0
        %854 = vmatpush.bf16.msra.mxu0 0
        %855 = vmatpush.bf16.msra.mxu0 0
        %856 = vmatpush.bf16.msra.mxu0 0
        %857 = vmatpush.bf16.msra.mxu0 %v850
        %858 = vmatpush.bf16.msra.mxu0 %v849
        %859 = vmatmul.bf16.gmra.mxu0 %v732
        %v860 = vpop.f32.mrf.mxu0
        %v861 = vadd.f32 0.0, %v860
        %v862 = vpop.f32.mrf.mxu0
        %v863 = vadd.f32 0.0, %v862
        %864 = vmatmul.bf16.gmra.mxu0 %v735
        %v865 = vpop.f32.mrf.mxu0
        %v866 = vadd.f32 0.0, %v865
        %v867 = vpop.f32.mrf.mxu0
        %v868 = vadd.f32 0.0, %v867
        %869 = vdwg.mxu0
        %v870 = vpack.c.bf16 %v863, %v861
        %v871 = vpack.c.bf16 %v868, %v866
        %872 = vmatpush.bf16.msra.mxu0 %v813
        %873 = vmatpush.bf16.msra.mxu0 %v812
        %874 = vmatpush.bf16.msra.mxu0 %v811
        %875 = vmatpush.bf16.msra.mxu0 %v810
        %876 = vmatpush.bf16.msra.mxu0 %v809
        %877 = vmatpush.bf16.msra.mxu0 %v808
        %878 = vmatpush.bf16.msra.mxu0 %v807
        %879 = vmatpush.bf16.msra.mxu0 %v806
        %880 = vmatmul.bf16.gmra.mxu0 %v870
        %v881 = vpop.f32.mrf.mxu0
        %v882 = vadd.f32 0.0, %v881
        %v883 = vpop.f32.mrf.mxu0
        %v884 = vadd.f32 0.0, %v883
        %885 = vmatmul.bf16.gmra.mxu0 %v871
        %v886 = vpop.f32.mrf.mxu0
        %v887 = vadd.f32 0.0, %v886
        %v888 = vpop.f32.mrf.mxu0
        %v889 = vadd.f32 0.0, %v888
        %890 = vdwg.mxu0
        %v891 = vadd.f32 %v710, %v882
        %v892 = vadd.f32 %v711, %v884
        %v893 = vadd.f32 %v712, %v887
        %v894 = vadd.f32 %v713, %v889
        %v895 = vmax.f32 %v891, 0.0
        %v896 = vmax.f32 %v892, 0.0
        %v897 = vmax.f32 %v893, 0.0
        %v898 = vmax.f32 %v894, 0.0
        %v899 = vpack.c.bf16 %v896, %v895
        %v900 = vpack.c.bf16 %v898, %v897
        %901 = vmatpush.bf16.msra.mxu0 0
        %902 = vmatpush.bf16.msra.mxu0 0
        %903 = vmatpush.bf16.msra.mxu0 0
        %904 = vmatpush.bf16.msra.mxu0 0
        %905 = vmatpush.bf16.msra.mxu0 0
        %906 = vmatpush.bf16.msra.mxu0 0
        %907 = vmatpush.bf16.msra.mxu0 %v900
        %908 = vmatpush.bf16.msra.mxu0 %v899
        %909 = vmatmul.bf16.gmra.mxu0 %v732
        %v910 = vpop.f32.mrf.mxu0
        %v911 = vadd.f32 0.0, %v910
        %v912 = vpop.f32.mrf.mxu0
        %v913 = vadd.f32 0.0, %v912
        %914 = vmatmul.bf16.gmra.mxu0 %v735
        %v915 = vpop.f32.mrf.mxu0
        %v916 = vadd.f32 0.0, %v915
        %v917 = vpop.f32.mrf.mxu0
        %v918 = vadd.f32 0.0, %v917
        %919 = vdwg.mxu0
        %v920 = vpack.c.bf16 %v913, %v911
        %v921 = vpack.c.bf16 %v918, %v916
        %922 = vmatpush.bf16.msra.mxu0 %v813
        %923 = vmatpush.bf16.msra.mxu0 %v812
        %924 = vmatpush.bf16.msra.mxu0 %v811
        %925 = vmatpush.bf16.msra.mxu0 %v810
        %926 = vmatpush.bf16.msra.mxu0 %v809
        %927 = vmatpush.bf16.msra.mxu0 %v808
        %928 = vmatpush.bf16.msra.mxu0 %v807
        %929 = vmatpush.bf16.msra.mxu0 %v806
        %930 = vmatmul.bf16.gmra.mxu0 %v920
        %v931 = vpop.f32.mrf.mxu0
        %v932 = vadd.f32 0.0, %v931
        %v933 = vpop.f32.mrf.mxu0
        %v934 = vadd.f32 0.0, %v933
        %935 = vmatmul.bf16.gmra.mxu0 %v921
        %v936 = vpop.f32.mrf.mxu0
        %v937 = vadd.f32 0.0, %v936
        %v938 = vpop.f32.mrf.mxu0
        %v939 = vadd.f32 0.0, %v938
        %940 = vdwg.mxu0
        %v941 = vadd.f32 %v710, %v932
        %v942 = vadd.f32 %v711, %v934
        %v943 = vadd.f32 %v712, %v937
        %v944 = vadd.f32 %v713, %v939
        %v945 = vmax.f32 %v941, 0.0
        %v946 = vmax.f32 %v942, 0.0
        %v947 = vmax.f32 %v943, 0.0
        %v948 = vmax.f32 %v944, 0.0
        %v949 = vpack.c.bf16 %v946, %v945
        %v950 = vpack.c.bf16 %v948, %v947
        %v951 = vld [vmem:[%s519] sm:$0xf]
        %v952 = vld [vmem:[%s519 + $0x4] sm:$0xf]
        %v953 = vld [vmem:[%s519 + $0x8] sm:$0xf]
        %v954 = vld [vmem:[%s519 + $0xc] sm:$0xf]
        %v955 = vld [vmem:[%s519 + $0x10] sm:$0xf]
        %v956 = vld [vmem:[%s519 + $0x14] sm:$0xf]
        %v957 = vld [vmem:[%s519 + $0x18] sm:$0xf]
        %v958 = vld [vmem:[%s519 + $0x1c] sm:$0xf]
        %v959 = vld [vmem:[%s519 + $0x20] sm:$0xf]
        %v960 = vld [vmem:[%s519 + $0x24] sm:$0xf]
        %v961 = vld [vmem:[%s519 + $0x28] sm:$0xf]
        %v962 = vld [vmem:[%s519 + $0x2c] sm:$0xf]
        %v963 = vld [vmem:[%s519 + $0x30] sm:$0xf]
        %v964 = vld [vmem:[%s519 + $0x34] sm:$0xf]
        %v965 = vld [vmem:[%s519 + $0x38] sm:$0xf]
        %v966 = vld [vmem:[%s519 + $0x3c] sm:$0xf]
        %v967 = vld [vmem:[%s519 + $0x40] sm:$0xf]
        %v968 = vld [vmem:[%s519 + $0x44] sm:$0xf]
        %v969 = vld [vmem:[%s519 + $0x48] sm:$0xf]
        %v970 = vld [vmem:[%s519 + $0x4c] sm:$0xf]
        %v971 = vld [vmem:[%s519 + $0x50] sm:$0xf]
        %v972 = vld [vmem:[%s519 + $0x54] sm:$0xf]
        %v973 = vld [vmem:[%s519 + $0x58] sm:$0xf]
        %v974 = vld [vmem:[%s519 + $0x5c] sm:$0xf]
        %v975 = vld [vmem:[%s519 + $0x60] sm:$0xf]
        %v976 = vld [vmem:[%s519 + $0x64] sm:$0xf]
        %v977 = vld [vmem:[%s519 + $0x68] sm:$0xf]
        %v978 = vld [vmem:[%s519 + $0x6c] sm:$0xf]
        %v979 = vld [vmem:[%s519 + $0x70] sm:$0xf]
        %v980 = vld [vmem:[%s519 + $0x74] sm:$0xf]
        %v981 = vld [vmem:[%s519 + $0x78] sm:$0xf]
        %v982 = vld [vmem:[%s519 + $0x7c] sm:$0xf]
        %v999 = vunpack.c.l.b16 %v967
        %v1000 = vunpack.c.l.b16 %v968
        %v1001 = vunpack.c.l.b16 %v969
        %v1002 = vunpack.c.l.b16 %v970
        %v1003 = vunpack.c.l.b16 %v971
        %v1004 = vunpack.c.l.b16 %v972
        %v1005 = vunpack.c.l.b16 %v973
        %v1006 = vunpack.c.l.b16 %v974
        %v1007 = vunpack.c.l.b16 %v975
        %v1008 = vunpack.c.l.b16 %v976
        %v1009 = vunpack.c.l.b16 %v977
        %v1010 = vunpack.c.l.b16 %v978
        %v1011 = vunpack.c.l.b16 %v979
        %v1012 = vunpack.c.l.b16 %v980
        %v1013 = vunpack.c.l.b16 %v981
        %v1014 = vunpack.c.l.b16 %v982
        %v1015 = vpack.c.b16 %v1000, %v999
        %v1016 = vpack.c.b16 %v1002, %v1001
        %v1017 = vpack.c.b16 %v1004, %v1003
        %v1018 = vpack.c.b16 %v1006, %v1005
        %v1019 = vpack.c.b16 %v1008, %v1007
        %v1020 = vpack.c.b16 %v1010, %v1009
        %v1021 = vpack.c.b16 %v1012, %v1011
        %v1022 = vpack.c.b16 %v1014, %v1013
        %1031 = vmatpush.bf16.msra.mxu0 %v1022
        %1032 = vmatpush.bf16.msra.mxu0 %v1021
        %1033 = vmatpush.bf16.msra.mxu0 %v1020
        %1034 = vmatpush.bf16.msra.mxu0 %v1019
        %1035 = vmatpush.bf16.msra.mxu0 %v1018
        %1036 = vmatpush.bf16.msra.mxu0 %v1017
        %1037 = vmatpush.bf16.msra.mxu0 %v1016
        %1038 = vmatpush.bf16.msra.mxu0 %v1015
        %1039 = vmatmul.bf16.gmra.mxu0 %v949
        %v1040 = vpop.f32.mrf.mxu0
        %v1041 = vadd.f32 0.0, %v1040
        %v1042 = vpop.f32.mrf.mxu0
        %v1043 = vadd.f32 0.0, %v1042
        %1044 = vmatmul.bf16.gmra.mxu0 %v950
        %v1045 = vpop.f32.mrf.mxu0
        %v1046 = vadd.f32 0.0, %v1045
        %v1047 = vpop.f32.mrf.mxu0
        %v1048 = vadd.f32 0.0, %v1047
        %1049 = vdwg.mxu0
        %v1066 = vunpack.c.l.b16 %v951
        %v1067 = vunpack.c.l.b16 %v952
        %v1068 = vunpack.c.l.b16 %v953
        %v1069 = vunpack.c.l.b16 %v954
        %v1070 = vunpack.c.l.b16 %v955
        %v1071 = vunpack.c.l.b16 %v956
        %v1072 = vunpack.c.l.b16 %v957
        %v1073 = vunpack.c.l.b16 %v958
        %v1074 = vunpack.c.l.b16 %v959
        %v1075 = vunpack.c.l.b16 %v960
        %v1076 = vunpack.c.l.b16 %v961
        %v1077 = vunpack.c.l.b16 %v962
        %v1078 = vunpack.c.l.b16 %v963
        %v1079 = vunpack.c.l.b16 %v964
        %v1080 = vunpack.c.l.b16 %v965
        %v1081 = vunpack.c.l.b16 %v966
        %v1082 = vpack.c.b16 %v1067, %v1066
        %v1083 = vpack.c.b16 %v1069, %v1068
        %v1084 = vpack.c.b16 %v1071, %v1070
        %v1085 = vpack.c.b16 %v1073, %v1072
        %v1086 = vpack.c.b16 %v1075, %v1074
        %v1087 = vpack.c.b16 %v1077, %v1076
        %v1088 = vpack.c.b16 %v1079, %v1078
        %v1089 = vpack.c.b16 %v1081, %v1080
        %1098 = vmatpush.bf16.msra.mxu0 %v1089
        %1099 = vmatpush.bf16.msra.mxu0 %v1088
        %1100 = vmatpush.bf16.msra.mxu0 %v1087
        %1101 = vmatpush.bf16.msra.mxu0 %v1086
        %1102 = vmatpush.bf16.msra.mxu0 %v1085
        %1103 = vmatpush.bf16.msra.mxu0 %v1084
        %1104 = vmatpush.bf16.msra.mxu0 %v1083
        %1105 = vmatpush.bf16.msra.mxu0 %v1082
        %1106 = vmatmul.bf16.gmra.mxu0 %v639
        %v1107 = vpop.f32.mrf.mxu0
        %v1108 = vadd.f32 %v1041, %v1107
        %v1109 = vpop.f32.mrf.mxu0
        %v1110 = vadd.f32 %v1043, %v1109
        %1111 = vmatmul.bf16.gmra.mxu0 %v640
        %v1112 = vpop.f32.mrf.mxu0
        %v1113 = vadd.f32 %v1046, %v1112
        %v1114 = vpop.f32.mrf.mxu0
        %v1115 = vadd.f32 %v1048, %v1114
        %1116 = vdwg.mxu0
        %v1117 = vperm.slane %v613, 1
        %v1118 = vadd.f32 %v1108, %v1117
        %v1119 = vadd.f32 %v1110, %v1117
        %v1120 = vadd.f32 %v1113, %v1117
        %v1121 = vadd.f32 %v1115, %v1117
        %v1122 = vmax.f32 %v1118, 0.0
        %v1123 = vmax.f32 %v1119, 0.0
        %v1124 = vmax.f32 %v1120, 0.0
        %v1125 = vmax.f32 %v1121, 0.0
        %v1126 = vpack.c.bf16 %v1123, %v1122
        %v1127 = vpack.c.bf16 %v1125, %v1124
        %v1128 = vld [vmem:[%s529] sm:$0xf]
        %v1129 = vld [vmem:[%s529 + $0x4] sm:$0xf]
        %v1130 = vld [vmem:[%s529 + $0x8] sm:$0xf]
        %v1131 = vld [vmem:[%s529 + $0xc] sm:$0xf]
        %v1132 = vld [vmem:[%s529 + $0x10] sm:$0xf]
        %v1133 = vld [vmem:[%s529 + $0x14] sm:$0xf]
        %v1134 = vld [vmem:[%s529 + $0x18] sm:$0xf]
        %v1135 = vld [vmem:[%s529 + $0x1c] sm:$0xf]
        %v1136 = vld [vmem:[%s529 + $0x20] sm:$0xf]
        %v1137 = vld [vmem:[%s529 + $0x24] sm:$0xf]
        %v1138 = vld [vmem:[%s529 + $0x28] sm:$0xf]
        %v1139 = vld [vmem:[%s529 + $0x2c] sm:$0xf]
        %v1140 = vld [vmem:[%s529 + $0x30] sm:$0xf]
        %v1141 = vld [vmem:[%s529 + $0x34] sm:$0xf]
        %v1142 = vld [vmem:[%s529 + $0x38] sm:$0xf]
        %v1143 = vld [vmem:[%s529 + $0x3c] sm:$0xf]
        %v1144 = vld [vmem:[%s489] sm:$0xf]
        %v1145 = vld [vmem:[%s489 + $0x4] sm:$0xf]
        %v1146 = vld [vmem:[%s489 + $0x8] sm:$0xf]
        %v1147 = vld [vmem:[%s489 + $0xc] sm:$0xf]
        %v1148 = vld [vmem:[%s529 + $0x40] sm:$0xf]
        %v1149 = vld [vmem:[%s529 + $0x44] sm:$0xf]
        %v1150 = vld [vmem:[%s529 + $0x48] sm:$0xf]
        %v1151 = vld [vmem:[%s529 + $0x4c] sm:$0xf]
        %v1152 = vld [vmem:[%s529 + $0x50] sm:$0xf]
        %v1153 = vld [vmem:[%s529 + $0x54] sm:$0xf]
        %v1154 = vld [vmem:[%s529 + $0x58] sm:$0xf]
        %v1155 = vld [vmem:[%s529 + $0x5c] sm:$0xf]
        %v1156 = vld [vmem:[%s529 + $0x60] sm:$0xf]
        %v1157 = vld [vmem:[%s529 + $0x64] sm:$0xf]
        %v1158 = vld [vmem:[%s529 + $0x68] sm:$0xf]
        %v1159 = vld [vmem:[%s529 + $0x6c] sm:$0xf]
        %v1160 = vld [vmem:[%s529 + $0x70] sm:$0xf]
        %v1161 = vld [vmem:[%s529 + $0x74] sm:$0xf]
        %v1162 = vld [vmem:[%s529 + $0x78] sm:$0xf]
        %v1163 = vld [vmem:[%s529 + $0x7c] sm:$0xf]
        %v1168 = vunpack.c.l.b16 %v1144
        %v1169 = vunpack.c.l.b16 %v1145
        %v1170 = vunpack.c.l.b16 %v1146
        %v1171 = vunpack.c.l.b16 %v1147
        %v1172 = vpack.c.b16 %v1169, %v1168
        %v1173 = vpack.c.b16 %v1171, %v1170
        %v1192 = vunpack.c.l.b16 %v1148
        %v1193 = vunpack.c.l.b16 %v1149
        %v1194 = vunpack.c.l.b16 %v1150
        %v1195 = vunpack.c.l.b16 %v1151
        %v1196 = vunpack.c.l.b16 %v1152
        %v1197 = vunpack.c.l.b16 %v1153
        %v1198 = vunpack.c.l.b16 %v1154
        %v1199 = vunpack.c.l.b16 %v1155
        %v1200 = vunpack.c.l.b16 %v1156
        %v1201 = vunpack.c.l.b16 %v1157
        %v1202 = vunpack.c.l.b16 %v1158
        %v1203 = vunpack.c.l.b16 %v1159
        %v1204 = vunpack.c.l.b16 %v1160
        %v1205 = vunpack.c.l.b16 %v1161
        %v1206 = vunpack.c.l.b16 %v1162
        %v1207 = vunpack.c.l.b16 %v1163
        %v1208 = vpack.c.b16 %v1193, %v1192
        %v1209 = vpack.c.b16 %v1195, %v1194
        %v1210 = vpack.c.b16 %v1197, %v1196
        %v1211 = vpack.c.b16 %v1199, %v1198
        %v1212 = vpack.c.b16 %v1201, %v1200
        %v1213 = vpack.c.b16 %v1203, %v1202
        %v1214 = vpack.c.b16 %v1205, %v1204
        %v1215 = vpack.c.b16 %v1207, %v1206
        %1224 = vmatpush.bf16.msra.mxu0 %v1215
        %1225 = vmatpush.bf16.msra.mxu0 %v1214
        %1226 = vmatpush.bf16.msra.mxu0 %v1213
        %1227 = vmatpush.bf16.msra.mxu0 %v1212
        %1228 = vmatpush.bf16.msra.mxu0 %v1211
        %1229 = vmatpush.bf16.msra.mxu0 %v1210
        %1230 = vmatpush.bf16.msra.mxu0 %v1209
        %1231 = vmatpush.bf16.msra.mxu0 %v1208
        %1232 = vmatmul.bf16.gmra.mxu0 %v1172
        %v1233 = vpop.f32.mrf.mxu0
        %v1234 = vadd.f32 0.0, %v1233
        %v1235 = vpop.f32.mrf.mxu0
        %v1236 = vadd.f32 0.0, %v1235
        %1237 = vmatmul.bf16.gmra.mxu0 %v1173
        %v1238 = vpop.f32.mrf.mxu0
        %v1239 = vadd.f32 0.0, %v1238
        %v1240 = vpop.f32.mrf.mxu0
        %v1241 = vadd.f32 0.0, %v1240
        %1242 = vdwg.mxu0
        %v1259 = vunpack.c.l.b16 %v1128
        %v1260 = vunpack.c.l.b16 %v1129
        %v1261 = vunpack.c.l.b16 %v1130
        %v1262 = vunpack.c.l.b16 %v1131
        %v1263 = vunpack.c.l.b16 %v1132
        %v1264 = vunpack.c.l.b16 %v1133
        %v1265 = vunpack.c.l.b16 %v1134
        %v1266 = vunpack.c.l.b16 %v1135
        %v1267 = vunpack.c.l.b16 %v1136
        %v1268 = vunpack.c.l.b16 %v1137
        %v1269 = vunpack.c.l.b16 %v1138
        %v1270 = vunpack.c.l.b16 %v1139
        %v1271 = vunpack.c.l.b16 %v1140
        %v1272 = vunpack.c.l.b16 %v1141
        %v1273 = vunpack.c.l.b16 %v1142
        %v1274 = vunpack.c.l.b16 %v1143
        %v1275 = vpack.c.b16 %v1260, %v1259
        %v1276 = vpack.c.b16 %v1262, %v1261
        %v1277 = vpack.c.b16 %v1264, %v1263
        %v1278 = vpack.c.b16 %v1266, %v1265
        %v1279 = vpack.c.b16 %v1268, %v1267
        %v1280 = vpack.c.b16 %v1270, %v1269
        %v1281 = vpack.c.b16 %v1272, %v1271
        %v1282 = vpack.c.b16 %v1274, %v1273
        %1291 = vmatpush.bf16.msra.mxu0 %v1282
        %1292 = vmatpush.bf16.msra.mxu0 %v1281
        %1293 = vmatpush.bf16.msra.mxu0 %v1280
        %1294 = vmatpush.bf16.msra.mxu0 %v1279
        %1295 = vmatpush.bf16.msra.mxu0 %v1278
        %1296 = vmatpush.bf16.msra.mxu0 %v1277
        %1297 = vmatpush.bf16.msra.mxu0 %v1276
        %1298 = vmatpush.bf16.msra.mxu0 %v1275
        %1299 = vmatmul.bf16.gmra.mxu0 %v1126
        %v1300 = vpop.f32.mrf.mxu0
        %v1301 = vadd.f32 %v1234, %v1300
        %v1302 = vpop.f32.mrf.mxu0
        %v1303 = vadd.f32 %v1236, %v1302
        %1304 = vmatmul.bf16.gmra.mxu0 %v1127
        %v1305 = vpop.f32.mrf.mxu0
        %v1306 = vadd.f32 %v1239, %v1305
        %v1307 = vpop.f32.mrf.mxu0
        %v1308 = vadd.f32 %v1241, %v1307
        %1309 = vdwg.mxu0
        %v1310 = vperm.slane %v613, 2
        %v1311 = vadd.f32 %v1301, %v1310
        %v1312 = vadd.f32 %v1303, %v1310
        %v1313 = vadd.f32 %v1306, %v1310
        %v1314 = vadd.f32 %v1308, %v1310
        %v1315 = vmax.f32 %v1311, 0.0
        %v1316 = vmax.f32 %v1312, 0.0
        %v1317 = vmax.f32 %v1313, 0.0
        %v1318 = vmax.f32 %v1314, 0.0
        %1319 = vst [vmem:[%s607] sm:$0xff] %v1315
        %1320 = vst [vmem:[%s607 + $0x8] sm:$0xff] %v1316
        %1321 = vst [vmem:[%s607 + $0x10] sm:$0xff] %v1317
        %1322 = vst [vmem:[%s607 + $0x18] sm:$0xff] %v1318
        %s1323 = sand.u32 %s253, 1
        %s1324 = scalar_lea.sflag [#allocation4], %s1323
        %s1325 = sand.u32 %s253, 1
        %s1326 = smul.addr %s1325, 32
        %s1327 = scalar_lea.vmem [#allocation16], %s1326
        // Predicated region
        $region85: #{tpu_custom_call.1} parent=51 // pred_check
          %p1328 = pneg %p263
        $region86: #{tpu_custom_call.1} parent=51 // pred_check_branch
          %1330 = sbr.rel (%p1328) target = $region88
        $region87: #{tpu_custom_call.1} parent=51 // pred_region
          %1332 = vsyncadd %s1324, 0
          %s1333 = smul.addr %s37, 4
          %s1334 = smul.addr %s1333, 8
          %s1335 = scalar_lea.hbm %s8, %s1334
          %s1336 = sshll.u32 %s1327, 4
          %s1337 = int_to_ptr.vmem [resolvable:$true] %s1336
          %s1338 = sshll.u32 %s1335, 4
          %s1339 = int_to_ptr.hbm [resolvable:$true] %s1338
          %1344 = dma.vmem_to_hbm [thread:$0]  %s1337, 512, %s1339, %s1324, 128, 128, 8
        $region88: #{tpu_custom_call.1} parent=51 // pred_fallthru
          _
      $region52: #{tpu_custom_call.1} parent=5 // pred_fallthru
        _
      %p1345 = scmp.le.s32.totalorder 2, %s32
      // Predicated region
      $region89: #{tpu_custom_call.1} parent=5 // pred_check
        %p1346 = pneg %p1345
      $region90: #{tpu_custom_call.1} parent=5 // pred_check_branch
        %1348 = sbr.rel (%p1346) target = $region92
      $region91: #{tpu_custom_call.1} parent=5 // pred_region
        %s1349 = ssub.s32 %s32, 2
        // Predicated region
        $region93: #{tpu_custom_call.1} parent=91 // pred_check
          %p1350 = pneg %p269
        $region94: #{tpu_custom_call.1} parent=91 // pred_check_branch
          %1352 = sbr.rel (%p1350) target = $region96
        $region95: #{tpu_custom_call.1} parent=91 // pred_region
          %s1353 = sand.u32 %s254, 1
          %s1354 = scalar_lea.sflag [#allocation4], %s1353
          %s1355 = sand.u32 %s254, 1
          %s1356 = smul.addr %s1355, 32
          %s1357 = scalar_lea.vmem [#allocation16], %s1356
          %1359 = dma.done %s1354, 512
        $region96: #{tpu_custom_call.1} parent=91 // pred_fallthru
          _
      $region92: #{tpu_custom_call.1} parent=5 // pred_fallthru
        _
    $region6: #{tpu_custom_call.1} parent=1 // loop_footer
      %s36 = sadd.s32 1, %s32
    $region7: #{tpu_custom_call.1} parent=1 // loop_footer_branch
      %31 = sbr.rel target = $region3
    $region8: #{tpu_custom_call.1} parent=1 // loop_exit
      _
    %1360 = vsyncpa [#allocation3], 1
    %s1361 = scalar_lea.sflag [#allocation3], 1
    %1362 = vsyncpa %s1361, 1
    %1363 = vsyncpa [#allocation6], 1
    %s1364 = scalar_lea.sflag [#allocation6], 1
    %1365 = vsyncpa %s1364, 1
    %1366 = vsyncpa [#allocation9], 1
    %s1367 = scalar_lea.sflag [#allocation9], 1
    %1368 = vsyncpa %s1367, 1
    %1369 = vsyncpa [#allocation12], 1
    %s1370 = scalar_lea.sflag [#allocation12], 1
    %1371 = vsyncpa %s1370, 1
    %1372 = vsyncpa [#allocation15], 1
    %s1373 = scalar_lea.sflag [#allocation15], 1
    %1374 = vsyncpa %s1373, 1
    %1375 = vsyncpa [#allocation4], 1
    %s1376 = scalar_lea.sflag [#allocation4], 1
    %1377 = vsyncpa %s1376, 1

</llo_original>
